<compile_context>
chip_gen: v6e
topology: v6e:2x2x1
jax: 0.10.0
libtpu: 0.0.40
codegen_flags: <defaults>
</compile_context>

<pallas_src>
import numpy as np
import jax
import jax.numpy as jnp
from jax.experimental import pallas as pl
from jax.experimental.pallas import tpu as pltpu


# ----------------------------- math helpers --------------------------------

def _layer_norm(x, gamma, beta, eps=1e-5):
    # PyTorch nn.LayerNorm: biased variance, eps inside the sqrt.
    mu = jnp.mean(x, axis=-1, keepdims=True)
    xm = x - mu
    var = jnp.mean(xm * xm, axis=-1, keepdims=True)
    return xm * jax.lax.rsqrt(var + eps) * gamma + beta


def _gelu_exact(x):
    # PyTorch nn.GELU() default (approximate='none'): 0.5*x*(1+erf(x/sqrt(2)))
    return 0.5 * x * (1.0 + jax.lax.erf(x * (1.0 / np.sqrt(2.0))))


# --------------------------------- kernel ----------------------------------

def grid_net_kernel(x_ref, w_in_ref, b_in_ref, ln0_g_ref, ln0_b_ref,
                    gb_ref, lng_ref, lnb_ref, w_out_ref, b_out_ref, out_ref):
    TB = x_ref.shape[0]
    H = w_in_ref.shape[1]
    grid_width = gb_ref.shape[0]

    # linear_in: bf16 weight DMA, f32 MXU accumulation; then LayerNorm whose
    # affine params already include the first GridLayer's elementwise weight.
    w_in = w_in_ref[...].astype(jnp.float32)
    h = jnp.dot(x_ref[...], w_in, preferred_element_type=jnp.float32)
    h = h + b_in_ref[...]
    h = _layer_norm(h, ln0_g_ref[...], ln0_b_ref[...])

    # Hoisted lane masks for the zero padding of the ones(3) neighbor sum.
    lane = jax.lax.broadcasted_iota(jnp.int32, (TB, H), 1)
    not_first = lane != 0
    not_last = lane != H - 1

    # NeuralGrid: grid_width sequential GridBlocks (static unroll; W is small).
    for g in range(grid_width):
        # `h` already carries the GridLayer elementwise weight (folded into the
        # preceding LayerNorm affine in the wrapper).
        left = jnp.where(not_first, pltpu.roll(h, 1, axis=1), 0.0)
        right = jnp.where(not_last, pltpu.roll(h, H - 1, axis=1), 0.0)
        z = left + h + right + gb_ref[pl.ds(g, 1), :]

        # GridBlock: GELU -> LayerNorm (affine pre-scaled by next block's grid
        # weight, except for the last block) -> Dropout.
        z = _gelu_exact(z)
        h = _layer_norm(z, lng_ref[pl.ds(g, 1), :], lnb_ref[pl.ds(g, 1), :])
        # TODO(synk): Dropout(p=0.1) is treated as identity (inference semantics).

    # linear_out (lane-padded to 128 output columns).
    out = jnp.dot(h, w_out_ref[...], preferred_element_type=jnp.float32)
    out_ref[...] = (out + b_out_ref[...]).astype(out_ref.dtype)


# --------------------------------- wrapper ---------------------------------

def _prepare_kernel_params(params):
    """Fold GridLayer weights into preceding LayerNorm affines, pad linear_out."""
    (w_in, b_in, ln0_g, ln0_b, gw, gb, lng, lnb, w_out, b_out) = params
    W, H = gw.shape

    # Exact fold: y = LN(x)*gw = norm(x)*(gamma*gw) + beta*gw.
    ln0_gf = ln0_g * gw[0:1, :]
    ln0_bf = ln0_b * gw[0:1, :]
    if W > 1:
        scale = jnp.concatenate([gw[1:, :], jnp.ones((1, H), gw.dtype)], axis=0)
    else:
        scale = jnp.ones_like(gw)
    lng_f = lng * scale
    lnb_f = lnb * scale

    # Lane-pad linear_out to a multiple of 128 output columns (zeros).
    n_out = w_out.shape[1]
    n_pad = ((n_out + 127) // 128) * 128
    w_out_p = jnp.zeros((H, n_pad), jnp.float32).at[:, :n_out].set(w_out)
    b_out_p = jnp.zeros((1, n_pad), jnp.float32).at[:, :n_out].set(b_out)

    return (w_in, b_in, ln0_gf, ln0_bf, gb, lng_f, lnb_f, w_out_p, b_out_p), n_out


def grid_neural_network_2d(x_nchw, params, *, batch_tile=512):
    kparams, n_out = _prepare_kernel_params(params)
    (w_in, b_in, ln0_g, ln0_b, gb, lng, lnb, w_out_p, b_out_p) = kparams

    B = x_nchw.shape[0]
    x_flat = x_nchw.reshape(B, -1).astype(jnp.float32)  # == torch.flatten(start_dim=1)
    D = x_flat.shape[1]
    n_pad = w_out_p.shape[1]

    # Pad batch to a sublane multiple (8) and pick a batch tile; large batches
    # get pipelined / megacore-sharded, tiny batches fall back to one program.
    B8 = ((B + 7) // 8) * 8
    TB = min(((batch_tile + 7) // 8) * 8, B8)
    B_pad = ((B8 + TB - 1) // TB) * TB
    if B_pad != B:
        x_flat = jnp.pad(x_flat, ((0, B_pad - B), (0, 0)))
    n_tiles = B_pad // TB

    in_specs = [
        pl.BlockSpec((TB, D), lambda i: (i, 0)),            # x: tiled over batch
        pl.BlockSpec(w_in.shape, lambda i: (0, 0)),          # weights: resident
        pl.BlockSpec(b_in.shape, lambda i: (0, 0)),
        pl.BlockSpec(ln0_g.shape, lambda i: (0, 0)),
        pl.BlockSpec(ln0_b.shape, lambda i: (0, 0)),
        pl.BlockSpec(gb.shape, lambda i: (0, 0)),
        pl.BlockSpec(lng.shape, lambda i: (0, 0)),
        pl.BlockSpec(lnb.shape, lambda i: (0, 0)),
        pl.BlockSpec(w_out_p.shape, lambda i: (0, 0)),
        pl.BlockSpec(b_out_p.shape, lambda i: (0, 0)),
    ]
    out_specs = pl.BlockSpec((TB, n_pad), lambda i: (i, 0))

    out_padded = pl.pallas_call(
        grid_net_kernel,
        out_shape=jax.ShapeDtypeStruct((B_pad, n_pad), jnp.float32),
        grid=(n_tiles,),
        in_specs=in_specs,
        out_specs=out_specs,
        compiler_params=pltpu.CompilerParams(
            dimension_semantics=("parallel",)),
    )(x_flat, w_in, b_in, ln0_g, ln0_b, gb, lng, lnb, w_out_p, b_out_p)

    return out_padded[:B, :n_out]


# ---------------------------- parameter creation ---------------------------

def _xavier_uniform(key, shape, fan_in, fan_out):
    bound = np.sqrt(6.0 / (fan_in + fan_out))
    return jax.random.uniform(key, shape, jnp.float32, -bound, bound)


def init_params(key, n_inputs, grid_height, grid_width, n_classes):
    keys = jax.random.split(key, 2 + 2 * grid_width)
    # linear_in: torch weight (H, n_in), xavier, bias zeros. Stored transposed,
    # in bfloat16 (dominant HBM transfer; matmul still accumulates in f32).
    w_in = _xavier_uniform(keys[0], (n_inputs, grid_height),
                           n_inputs, grid_height).astype(jnp.bfloat16)
    b_in = jnp.zeros((1, grid_height), jnp.float32)
    # layer_norm after linear_in (default affine init)
    ln0_g = jnp.ones((1, grid_height), jnp.float32)
    ln0_b = jnp.zeros((1, grid_height), jnp.float32)
    # GridLayer weight/bias per block: shape (1, H), xavier_uniform (fan_in=H, fan_out=1)
    gw = jnp.concatenate(
        [_xavier_uniform(keys[2 + 2 * g], (1, grid_height), grid_height, 1)
         for g in range(grid_width)], axis=0)
    gb = jnp.concatenate(
        [_xavier_uniform(keys[3 + 2 * g], (1, grid_height), grid_height, 1)
         for g in range(grid_width)], axis=0)
    # per-block LayerNorm affine params (default init)
    lng = jnp.ones((grid_width, grid_height), jnp.float32)
    lnb = jnp.zeros((grid_width, grid_height), jnp.float32)
    # linear_out: torch weight (n_out, H), xavier, bias zeros. Stored transposed.
    w_out = _xavier_uniform(keys[1], (grid_height, n_classes), grid_height, n_classes)
    b_out = jnp.zeros((1, n_classes), jnp.float32)
    return (w_in, b_in, ln0_g, ln0_b, gw, gb, lng, lnb, w_out, b_out)


# ----------------------------- pure-JAX reference --------------------------

def reference(x_nchw, params):
    # Un-fused, PyTorch-faithful forward (same bf16-stored w_in, upcast to f32).
    (w_in, b_in, ln0_g, ln0_b, gw, gb, lng, lnb, w_out, b_out) = params
    B = x_nchw.shape[0]
    H = w_in.shape[1]
    x = x_nchw.reshape(B, -1)
    h = jnp.dot(x, w_in.astype(jnp.float32),
                precision=jax.lax.Precision.HIGHEST) + b_in
    h = _layer_norm(h, ln0_g, ln0_b)
    for g in range(gw.shape[0]):
        y = h * gw[g:g + 1, :]
        left = jnp.concatenate([jnp.zeros((B, 1), jnp.float32), y[:, :H - 1]], axis=1)
        right = jnp.concatenate([y[:, 1:], jnp.zeros((B, 1), jnp.float32)], axis=1)
        z = left + y + right + gb[g:g + 1, :]
        z = _gelu_exact(z)
        h = _layer_norm(z, lng[g:g + 1, :], lnb[g:g + 1, :])
    return jnp.dot(h, w_out, precision=jax.lax.Precision.HIGHEST) + b_out


# ----------------------------------- main -----------------------------------

if __name__ == "__main__":
    # Small shapes consistent with the module's config dict.
    B, C, IMG_H, IMG_W = 2, 4, 16, 16          # data: images
    GRID_HEIGHT, GRID_WIDTH = 128, 4           # grid_2d
    N_CLASSES = 10
    N_INPUTS = C * IMG_H * IMG_W

    key = jax.random.PRNGKey(0)
    kx, kp = jax.random.split(key)
    x = jax.random.normal(kx, (B, C, IMG_H, IMG_W), jnp.float32)
    params = init_params(kp, N_INPUTS, GRID_HEIGHT, GRID_WIDTH, N_CLASSES)

    out = grid_neural_network_2d(x, params)
    out = jax.block_until_ready(out)

    ref = reference(x, params)
    np.testing.assert_allclose(np.asarray(out), np.asarray(ref), rtol=1e-2, atol=1e-2)

    print("KERNEL_OK")
</pallas_src>

<mosaic_0001>
module attributes {stable_mosaic.version = 11 : i64} {
  func.func @grid_net_kernel(%arg0: i32, %arg1: memref<8x1024xf32, #tpu.memory_space<vmem>>, %arg2: memref<1024x128xbf16, #tpu.memory_space<vmem>>, %arg3: memref<1x128xf32, #tpu.memory_space<vmem>>, %arg4: memref<1x128xf32, #tpu.memory_space<vmem>>, %arg5: memref<1x128xf32, #tpu.memory_space<vmem>>, %arg6: memref<4x128xf32, #tpu.memory_space<vmem>>, %arg7: memref<4x128xf32, #tpu.memory_space<vmem>>, %arg8: memref<4x128xf32, #tpu.memory_space<vmem>>, %arg9: memref<128x128xf32, #tpu.memory_space<vmem>>, %arg10: memref<1x128xf32, #tpu.memory_space<vmem>>, %arg11: memref<8x128xf32, #tpu.memory_space<vmem>>) attributes {dimension_semantics = [#tpu.dimension_semantics<parallel>], iteration_bounds = array<i64: 1>, scalar_prefetch = 0 : i64, scratch_operands = 0 : i64, tpu.core_type = #tpu.core_type<tc>, window_params = [{transform_indices = @transform_0, window_bounds = array<i64: 8, 1024>}, {pipeline_mode = #tpu.pipeline_mode<synchronous>, transform_indices = @transform_1, window_bounds = array<i64: 1024, 128>}, {pipeline_mode = #tpu.pipeline_mode<synchronous>, transform_indices = @transform_2, window_bounds = array<i64: 1, 128>}, {pipeline_mode = #tpu.pipeline_mode<synchronous>, transform_indices = @transform_3, window_bounds = array<i64: 1, 128>}, {pipeline_mode = #tpu.pipeline_mode<synchronous>, transform_indices = @transform_4, window_bounds = array<i64: 1, 128>}, {pipeline_mode = #tpu.pipeline_mode<synchronous>, transform_indices = @transform_5, window_bounds = array<i64: 4, 128>}, {pipeline_mode = #tpu.pipeline_mode<synchronous>, transform_indices = @transform_6, window_bounds = array<i64: 4, 128>}, {pipeline_mode = #tpu.pipeline_mode<synchronous>, transform_indices = @transform_7, window_bounds = array<i64: 4, 128>}, {pipeline_mode = #tpu.pipeline_mode<synchronous>, transform_indices = @transform_8, window_bounds = array<i64: 128, 128>}, {pipeline_mode = #tpu.pipeline_mode<synchronous>, transform_indices = @transform_9, window_bounds = array<i64: 1, 128>}, {transform_indices = @transform_10, window_bounds = array<i64: 8, 128>}]} {
    %c0 = arith.constant 0 : index
    %c0_0 = arith.constant 0 : index
    %0 = vector.load %arg2[%c0, %c0_0] : memref<1024x128xbf16, #tpu.memory_space<vmem>>, vector<1024x128xbf16>
    %1 = arith.extf %0 : vector<1024x128xbf16> to vector<1024x128xf32>
    %c0_1 = arith.constant 0 : index
    %c0_2 = arith.constant 0 : index
    %2 = vector.load %arg1[%c0_1, %c0_2] : memref<8x1024xf32, #tpu.memory_space<vmem>>, vector<8x1024xf32>
    %cst = arith.constant dense<0.000000e+00> : vector<8x128xf32>
    %3 = tpu.matmul %2, %1, %cst {dimension_numbers = #tpu.dot_dimension_numbers<[1], [0], [0], [1], [0, 0, 1, 1], [], []>} : vector<8x1024xf32>, vector<1024x128xf32>, vector<8x128xf32> -> vector<8x128xf32>
    %c0_3 = arith.constant 0 : index
    %c0_4 = arith.constant 0 : index
    %4 = vector.load %arg3[%c0_3, %c0_4] : memref<1x128xf32, #tpu.memory_space<vmem>>, vector<1x128xf32>
    %5 = vector.broadcast %4 : vector<1x128xf32> to vector<8x128xf32>
    %6 = arith.addf %3, %5 : vector<8x128xf32>
    %c0_5 = arith.constant 0 : index
    %c0_6 = arith.constant 0 : index
    %7 = vector.load %arg4[%c0_5, %c0_6] : memref<1x128xf32, #tpu.memory_space<vmem>>, vector<1x128xf32>
    %c0_7 = arith.constant 0 : index
    %c0_8 = arith.constant 0 : index
    %8 = vector.load %arg5[%c0_7, %c0_8] : memref<1x128xf32, #tpu.memory_space<vmem>>, vector<1x128xf32>
    %cst_9 = arith.constant dense<0.000000e+00> : vector<8xf32>
    %9 = vector.multi_reduction <add>, %6, %cst_9 [1] : vector<8x128xf32> to vector<8xf32>
    %10 = vector.shape_cast %9 : vector<8xf32> to vector<8x1xf32>
    %cst_10 = arith.constant 1.280000e+02 : f32
    %11 = vector.broadcast %cst_10 : f32 to vector<8x1xf32>
    %12 = arith.divf %10, %11 : vector<8x1xf32>
    %13 = vector.broadcast %12 : vector<8x1xf32> to vector<8x128xf32>
    %14 = arith.subf %6, %13 : vector<8x128xf32>
    %15 = arith.mulf %14, %14 : vector<8x128xf32>
    %cst_11 = arith.constant dense<0.000000e+00> : vector<8xf32>
    %16 = vector.multi_reduction <add>, %15, %cst_11 [1] : vector<8x128xf32> to vector<8xf32>
    %17 = vector.shape_cast %16 : vector<8xf32> to vector<8x1xf32>
    %cst_12 = arith.constant 1.280000e+02 : f32
    %18 = vector.broadcast %cst_12 : f32 to vector<8x1xf32>
    %19 = arith.divf %17, %18 : vector<8x1xf32>
    %cst_13 = arith.constant 9.99999974E-6 : f32
    %20 = vector.broadcast %cst_13 : f32 to vector<8x1xf32>
    %21 = arith.addf %19, %20 : vector<8x1xf32>
    %22 = math.rsqrt %21 : vector<8x1xf32>
    %23 = vector.broadcast %22 : vector<8x1xf32> to vector<8x128xf32>
    %24 = arith.mulf %14, %23 : vector<8x128xf32>
    %25 = vector.broadcast %7 : vector<1x128xf32> to vector<8x128xf32>
    %26 = arith.mulf %24, %25 : vector<8x128xf32>
    %27 = vector.broadcast %8 : vector<1x128xf32> to vector<8x128xf32>
    %28 = arith.addf %26, %27 : vector<8x128xf32>
    %29 = tpu.iota {dimensions = array<i32: 1>} : vector<8x128xi32>
    %c0_i32 = arith.constant 0 : i32
    %30 = vector.broadcast %c0_i32 : i32 to vector<8x128xi32>
    %31 = arith.cmpi ne, %29, %30 : vector<8x128xi32>
    %c127_i32 = arith.constant 127 : i32
    %32 = vector.broadcast %c127_i32 : i32 to vector<8x128xi32>
    %33 = arith.cmpi ne, %29, %32 : vector<8x128xi32>
    %c1_i32 = arith.constant 1 : i32
    %34 = tpu.dynamic_rotate %28 by %c1_i32 dim 1 : vector<8x128xf32>, i32 -> vector<8x128xf32>
    %cst_14 = arith.constant 0.000000e+00 : f32
    %35 = vector.broadcast %cst_14 : f32 to vector<8x128xf32>
    %36 = arith.select %31, %34, %35 : vector<8x128xi1>, vector<8x128xf32>
    %c127_i32_15 = arith.constant 127 : i32
    %37 = tpu.dynamic_rotate %28 by %c127_i32_15 dim 1 : vector<8x128xf32>, i32 -> vector<8x128xf32>
    %cst_16 = arith.constant 0.000000e+00 : f32
    %38 = vector.broadcast %cst_16 : f32 to vector<8x128xf32>
    %39 = arith.select %33, %37, %38 : vector<8x128xi1>, vector<8x128xf32>
    %40 = arith.addf %36, %28 : vector<8x128xf32>
    %41 = arith.addf %40, %39 : vector<8x128xf32>
    %c0_17 = arith.constant 0 : index
    %c0_18 = arith.constant 0 : index
    %42 = vector.load %arg6[%c0_17, %c0_18] : memref<4x128xf32, #tpu.memory_space<vmem>>, vector<1x128xf32>
    %43 = vector.broadcast %42 : vector<1x128xf32> to vector<8x128xf32>
    %44 = arith.addf %41, %43 : vector<8x128xf32>
    %cst_19 = arith.constant 5.000000e-01 : f32
    %45 = vector.broadcast %cst_19 : f32 to vector<8x128xf32>
    %46 = arith.mulf %45, %44 : vector<8x128xf32>
    %cst_20 = arith.constant 0.707106769 : f32
    %47 = vector.broadcast %cst_20 : f32 to vector<8x128xf32>
    %48 = arith.mulf %44, %47 : vector<8x128xf32>
    %49 = math.erf %48 : vector<8x128xf32>
    %cst_21 = arith.constant 1.000000e+00 : f32
    %50 = vector.broadcast %cst_21 : f32 to vector<8x128xf32>
    %51 = arith.addf %50, %49 : vector<8x128xf32>
    %52 = arith.mulf %46, %51 : vector<8x128xf32>
    %c0_22 = arith.constant 0 : index
    %c0_23 = arith.constant 0 : index
    %53 = vector.load %arg7[%c0_22, %c0_23] : memref<4x128xf32, #tpu.memory_space<vmem>>, vector<1x128xf32>
    %c0_24 = arith.constant 0 : index
    %c0_25 = arith.constant 0 : index
    %54 = vector.load %arg8[%c0_24, %c0_25] : memref<4x128xf32, #tpu.memory_space<vmem>>, vector<1x128xf32>
    %cst_26 = arith.constant dense<0.000000e+00> : vector<8xf32>
    %55 = vector.multi_reduction <add>, %52, %cst_26 [1] : vector<8x128xf32> to vector<8xf32>
    %56 = vector.shape_cast %55 : vector<8xf32> to vector<8x1xf32>
    %cst_27 = arith.constant 1.280000e+02 : f32
    %57 = vector.broadcast %cst_27 : f32 to vector<8x1xf32>
    %58 = arith.divf %56, %57 : vector<8x1xf32>
    %59 = vector.broadcast %58 : vector<8x1xf32> to vector<8x128xf32>
    %60 = arith.subf %52, %59 : vector<8x128xf32>
    %61 = arith.mulf %60, %60 : vector<8x128xf32>
    %cst_28 = arith.constant dense<0.000000e+00> : vector<8xf32>
    %62 = vector.multi_reduction <add>, %61, %cst_28 [1] : vector<8x128xf32> to vector<8xf32>
    %63 = vector.shape_cast %62 : vector<8xf32> to vector<8x1xf32>
    %cst_29 = arith.constant 1.280000e+02 : f32
    %64 = vector.broadcast %cst_29 : f32 to vector<8x1xf32>
    %65 = arith.divf %63, %64 : vector<8x1xf32>
    %cst_30 = arith.constant 9.99999974E-6 : f32
    %66 = vector.broadcast %cst_30 : f32 to vector<8x1xf32>
    %67 = arith.addf %65, %66 : vector<8x1xf32>
    %68 = math.rsqrt %67 : vector<8x1xf32>
    %69 = vector.broadcast %68 : vector<8x1xf32> to vector<8x128xf32>
    %70 = arith.mulf %60, %69 : vector<8x128xf32>
    %71 = vector.broadcast %53 : vector<1x128xf32> to vector<8x128xf32>
    %72 = arith.mulf %70, %71 : vector<8x128xf32>
    %73 = vector.broadcast %54 : vector<1x128xf32> to vector<8x128xf32>
    %74 = arith.addf %72, %73 : vector<8x128xf32>
    %c1_i32_31 = arith.constant 1 : i32
    %75 = tpu.dynamic_rotate %74 by %c1_i32_31 dim 1 : vector<8x128xf32>, i32 -> vector<8x128xf32>
    %cst_32 = arith.constant 0.000000e+00 : f32
    %76 = vector.broadcast %cst_32 : f32 to vector<8x128xf32>
    %77 = arith.select %31, %75, %76 : vector<8x128xi1>, vector<8x128xf32>
    %c127_i32_33 = arith.constant 127 : i32
    %78 = tpu.dynamic_rotate %74 by %c127_i32_33 dim 1 : vector<8x128xf32>, i32 -> vector<8x128xf32>
    %cst_34 = arith.constant 0.000000e+00 : f32
    %79 = vector.broadcast %cst_34 : f32 to vector<8x128xf32>
    %80 = arith.select %33, %78, %79 : vector<8x128xi1>, vector<8x128xf32>
    %81 = arith.addf %77, %74 : vector<8x128xf32>
    %82 = arith.addf %81, %80 : vector<8x128xf32>
    %c1 = arith.constant 1 : index
    %c0_35 = arith.constant 0 : index
    %83 = vector.load %arg6[%c1, %c0_35] : memref<4x128xf32, #tpu.memory_space<vmem>>, vector<1x128xf32>
    %84 = vector.broadcast %83 : vector<1x128xf32> to vector<8x128xf32>
    %85 = arith.addf %82, %84 : vector<8x128xf32>
    %cst_36 = arith.constant 5.000000e-01 : f32
    %86 = vector.broadcast %cst_36 : f32 to vector<8x128xf32>
    %87 = arith.mulf %86, %85 : vector<8x128xf32>
    %cst_37 = arith.constant 0.707106769 : f32
    %88 = vector.broadcast %cst_37 : f32 to vector<8x128xf32>
    %89 = arith.mulf %85, %88 : vector<8x128xf32>
    %90 = math.erf %89 : vector<8x128xf32>
    %cst_38 = arith.constant 1.000000e+00 : f32
    %91 = vector.broadcast %cst_38 : f32 to vector<8x128xf32>
    %92 = arith.addf %91, %90 : vector<8x128xf32>
    %93 = arith.mulf %87, %92 : vector<8x128xf32>
    %c1_39 = arith.constant 1 : index
    %c0_40 = arith.constant 0 : index
    %94 = vector.load %arg7[%c1_39, %c0_40] : memref<4x128xf32, #tpu.memory_space<vmem>>, vector<1x128xf32>
    %c1_41 = arith.constant 1 : index
    %c0_42 = arith.constant 0 : index
    %95 = vector.load %arg8[%c1_41, %c0_42] : memref<4x128xf32, #tpu.memory_space<vmem>>, vector<1x128xf32>
    %cst_43 = arith.constant dense<0.000000e+00> : vector<8xf32>
    %96 = vector.multi_reduction <add>, %93, %cst_43 [1] : vector<8x128xf32> to vector<8xf32>
    %97 = vector.shape_cast %96 : vector<8xf32> to vector<8x1xf32>
    %cst_44 = arith.constant 1.280000e+02 : f32
    %98 = vector.broadcast %cst_44 : f32 to vector<8x1xf32>
    %99 = arith.divf %97, %98 : vector<8x1xf32>
    %100 = vector.broadcast %99 : vector<8x1xf32> to vector<8x128xf32>
    %101 = arith.subf %93, %100 : vector<8x128xf32>
    %102 = arith.mulf %101, %101 : vector<8x128xf32>
    %cst_45 = arith.constant dense<0.000000e+00> : vector<8xf32>
    %103 = vector.multi_reduction <add>, %102, %cst_45 [1] : vector<8x128xf32> to vector<8xf32>
    %104 = vector.shape_cast %103 : vector<8xf32> to vector<8x1xf32>
    %cst_46 = arith.constant 1.280000e+02 : f32
    %105 = vector.broadcast %cst_46 : f32 to vector<8x1xf32>
    %106 = arith.divf %104, %105 : vector<8x1xf32>
    %cst_47 = arith.constant 9.99999974E-6 : f32
    %107 = vector.broadcast %cst_47 : f32 to vector<8x1xf32>
    %108 = arith.addf %106, %107 : vector<8x1xf32>
    %109 = math.rsqrt %108 : vector<8x1xf32>
    %110 = vector.broadcast %109 : vector<8x1xf32> to vector<8x128xf32>
    %111 = arith.mulf %101, %110 : vector<8x128xf32>
    %112 = vector.broadcast %94 : vector<1x128xf32> to vector<8x128xf32>
    %113 = arith.mulf %111, %112 : vector<8x128xf32>
    %114 = vector.broadcast %95 : vector<1x128xf32> to vector<8x128xf32>
    %115 = arith.addf %113, %114 : vector<8x128xf32>
    %c1_i32_48 = arith.constant 1 : i32
    %116 = tpu.dynamic_rotate %115 by %c1_i32_48 dim 1 : vector<8x128xf32>, i32 -> vector<8x128xf32>
    %cst_49 = arith.constant 0.000000e+00 : f32
    %117 = vector.broadcast %cst_49 : f32 to vector<8x128xf32>
    %118 = arith.select %31, %116, %117 : vector<8x128xi1>, vector<8x128xf32>
    %c127_i32_50 = arith.constant 127 : i32
    %119 = tpu.dynamic_rotate %115 by %c127_i32_50 dim 1 : vector<8x128xf32>, i32 -> vector<8x128xf32>
    %cst_51 = arith.constant 0.000000e+00 : f32
    %120 = vector.broadcast %cst_51 : f32 to vector<8x128xf32>
    %121 = arith.select %33, %119, %120 : vector<8x128xi1>, vector<8x128xf32>
    %122 = arith.addf %118, %115 : vector<8x128xf32>
    %123 = arith.addf %122, %121 : vector<8x128xf32>
    %c2 = arith.constant 2 : index
    %c0_52 = arith.constant 0 : index
    %124 = vector.load %arg6[%c2, %c0_52] : memref<4x128xf32, #tpu.memory_space<vmem>>, vector<1x128xf32>
    %125 = vector.broadcast %124 : vector<1x128xf32> to vector<8x128xf32>
    %126 = arith.addf %123, %125 : vector<8x128xf32>
    %cst_53 = arith.constant 5.000000e-01 : f32
    %127 = vector.broadcast %cst_53 : f32 to vector<8x128xf32>
    %128 = arith.mulf %127, %126 : vector<8x128xf32>
    %cst_54 = arith.constant 0.707106769 : f32
    %129 = vector.broadcast %cst_54 : f32 to vector<8x128xf32>
    %130 = arith.mulf %126, %129 : vector<8x128xf32>
    %131 = math.erf %130 : vector<8x128xf32>
    %cst_55 = arith.constant 1.000000e+00 : f32
    %132 = vector.broadcast %cst_55 : f32 to vector<8x128xf32>
    %133 = arith.addf %132, %131 : vector<8x128xf32>
    %134 = arith.mulf %128, %133 : vector<8x128xf32>
    %c2_56 = arith.constant 2 : index
    %c0_57 = arith.constant 0 : index
    %135 = vector.load %arg7[%c2_56, %c0_57] : memref<4x128xf32, #tpu.memory_space<vmem>>, vector<1x128xf32>
    %c2_58 = arith.constant 2 : index
    %c0_59 = arith.constant 0 : index
    %136 = vector.load %arg8[%c2_58, %c0_59] : memref<4x128xf32, #tpu.memory_space<vmem>>, vector<1x128xf32>
    %cst_60 = arith.constant dense<0.000000e+00> : vector<8xf32>
    %137 = vector.multi_reduction <add>, %134, %cst_60 [1] : vector<8x128xf32> to vector<8xf32>
    %138 = vector.shape_cast %137 : vector<8xf32> to vector<8x1xf32>
    %cst_61 = arith.constant 1.280000e+02 : f32
    %139 = vector.broadcast %cst_61 : f32 to vector<8x1xf32>
    %140 = arith.divf %138, %139 : vector<8x1xf32>
    %141 = vector.broadcast %140 : vector<8x1xf32> to vector<8x128xf32>
    %142 = arith.subf %134, %141 : vector<8x128xf32>
    %143 = arith.mulf %142, %142 : vector<8x128xf32>
    %cst_62 = arith.constant dense<0.000000e+00> : vector<8xf32>
    %144 = vector.multi_reduction <add>, %143, %cst_62 [1] : vector<8x128xf32> to vector<8xf32>
    %145 = vector.shape_cast %144 : vector<8xf32> to vector<8x1xf32>
    %cst_63 = arith.constant 1.280000e+02 : f32
    %146 = vector.broadcast %cst_63 : f32 to vector<8x1xf32>
    %147 = arith.divf %145, %146 : vector<8x1xf32>
    %cst_64 = arith.constant 9.99999974E-6 : f32
    %148 = vector.broadcast %cst_64 : f32 to vector<8x1xf32>
    %149 = arith.addf %147, %148 : vector<8x1xf32>
    %150 = math.rsqrt %149 : vector<8x1xf32>
    %151 = vector.broadcast %150 : vector<8x1xf32> to vector<8x128xf32>
    %152 = arith.mulf %142, %151 : vector<8x128xf32>
    %153 = vector.broadcast %135 : vector<1x128xf32> to vector<8x128xf32>
    %154 = arith.mulf %152, %153 : vector<8x128xf32>
    %155 = vector.broadcast %136 : vector<1x128xf32> to vector<8x128xf32>
    %156 = arith.addf %154, %155 : vector<8x128xf32>
    %c1_i32_65 = arith.constant 1 : i32
    %157 = tpu.dynamic_rotate %156 by %c1_i32_65 dim 1 : vector<8x128xf32>, i32 -> vector<8x128xf32>
    %cst_66 = arith.constant 0.000000e+00 : f32
    %158 = vector.broadcast %cst_66 : f32 to vector<8x128xf32>
    %159 = arith.select %31, %157, %158 : vector<8x128xi1>, vector<8x128xf32>
    %c127_i32_67 = arith.constant 127 : i32
    %160 = tpu.dynamic_rotate %156 by %c127_i32_67 dim 1 : vector<8x128xf32>, i32 -> vector<8x128xf32>
    %cst_68 = arith.constant 0.000000e+00 : f32
    %161 = vector.broadcast %cst_68 : f32 to vector<8x128xf32>
    %162 = arith.select %33, %160, %161 : vector<8x128xi1>, vector<8x128xf32>
    %163 = arith.addf %159, %156 : vector<8x128xf32>
    %164 = arith.addf %163, %162 : vector<8x128xf32>
    %c3 = arith.constant 3 : index
    %c0_69 = arith.constant 0 : index
    %165 = vector.load %arg6[%c3, %c0_69] : memref<4x128xf32, #tpu.memory_space<vmem>>, vector<1x128xf32>
    %166 = vector.broadcast %165 : vector<1x128xf32> to vector<8x128xf32>
    %167 = arith.addf %164, %166 : vector<8x128xf32>
    %cst_70 = arith.constant 5.000000e-01 : f32
    %168 = vector.broadcast %cst_70 : f32 to vector<8x128xf32>
    %169 = arith.mulf %168, %167 : vector<8x128xf32>
    %cst_71 = arith.constant 0.707106769 : f32
    %170 = vector.broadcast %cst_71 : f32 to vector<8x128xf32>
    %171 = arith.mulf %167, %170 : vector<8x128xf32>
    %172 = math.erf %171 : vector<8x128xf32>
    %cst_72 = arith.constant 1.000000e+00 : f32
    %173 = vector.broadcast %cst_72 : f32 to vector<8x128xf32>
    %174 = arith.addf %173, %172 : vector<8x128xf32>
    %175 = arith.mulf %169, %174 : vector<8x128xf32>
    %c3_73 = arith.constant 3 : index
    %c0_74 = arith.constant 0 : index
    %176 = vector.load %arg7[%c3_73, %c0_74] : memref<4x128xf32, #tpu.memory_space<vmem>>, vector<1x128xf32>
    %c3_75 = arith.constant 3 : index
    %c0_76 = arith.constant 0 : index
    %177 = vector.load %arg8[%c3_75, %c0_76] : memref<4x128xf32, #tpu.memory_space<vmem>>, vector<1x128xf32>
    %cst_77 = arith.constant dense<0.000000e+00> : vector<8xf32>
    %178 = vector.multi_reduction <add>, %175, %cst_77 [1] : vector<8x128xf32> to vector<8xf32>
    %179 = vector.shape_cast %178 : vector<8xf32> to vector<8x1xf32>
    %cst_78 = arith.constant 1.280000e+02 : f32
    %180 = vector.broadcast %cst_78 : f32 to vector<8x1xf32>
    %181 = arith.divf %179, %180 : vector<8x1xf32>
    %182 = vector.broadcast %181 : vector<8x1xf32> to vector<8x128xf32>
    %183 = arith.subf %175, %182 : vector<8x128xf32>
    %184 = arith.mulf %183, %183 : vector<8x128xf32>
    %cst_79 = arith.constant dense<0.000000e+00> : vector<8xf32>
    %185 = vector.multi_reduction <add>, %184, %cst_79 [1] : vector<8x128xf32> to vector<8xf32>
    %186 = vector.shape_cast %185 : vector<8xf32> to vector<8x1xf32>
    %cst_80 = arith.constant 1.280000e+02 : f32
    %187 = vector.broadcast %cst_80 : f32 to vector<8x1xf32>
    %188 = arith.divf %186, %187 : vector<8x1xf32>
    %cst_81 = arith.constant 9.99999974E-6 : f32
    %189 = vector.broadcast %cst_81 : f32 to vector<8x1xf32>
    %190 = arith.addf %188, %189 : vector<8x1xf32>
    %191 = math.rsqrt %190 : vector<8x1xf32>
    %192 = vector.broadcast %191 : vector<8x1xf32> to vector<8x128xf32>
    %193 = arith.mulf %183, %192 : vector<8x128xf32>
    %194 = vector.broadcast %176 : vector<1x128xf32> to vector<8x128xf32>
    %195 = arith.mulf %193, %194 : vector<8x128xf32>
    %196 = vector.broadcast %177 : vector<1x128xf32> to vector<8x128xf32>
    %197 = arith.addf %195, %196 : vector<8x128xf32>
    %c0_82 = arith.constant 0 : index
    %c0_83 = arith.constant 0 : index
    %198 = vector.load %arg9[%c0_82, %c0_83] : memref<128x128xf32, #tpu.memory_space<vmem>>, vector<128x128xf32>
    %cst_84 = arith.constant dense<0.000000e+00> : vector<8x128xf32>
    %199 = tpu.matmul %197, %198, %cst_84 {dimension_numbers = #tpu.dot_dimension_numbers<[1], [0], [0], [1], [0, 0, 1, 1], [], []>} : vector<8x128xf32>, vector<128x128xf32>, vector<8x128xf32> -> vector<8x128xf32>
    %c0_85 = arith.constant 0 : index
    %c0_86 = arith.constant 0 : index
    %200 = vector.load %arg10[%c0_85, %c0_86] : memref<1x128xf32, #tpu.memory_space<vmem>>, vector<1x128xf32>
    %201 = vector.broadcast %200 : vector<1x128xf32> to vector<8x128xf32>
    %202 = arith.addf %199, %201 : vector<8x128xf32>
    %c0_87 = arith.constant 0 : index
    %c0_88 = arith.constant 0 : index
    %203 = vector.load %arg11[%c0_87, %c0_88] : memref<8x128xf32, #tpu.memory_space<vmem>>, vector<8x128xf32>
    tpu.vector_store %arg11[%c0_87, %c0_88], %202 {strides = array<i32>} : memref<8x128xf32, #tpu.memory_space<vmem>>, vector<8x128xf32>,
    return
  }
  func.func @transform_0(%arg0: i32) -> (i32, i32) {
    %c0_i32 = arith.constant 0 : i32
    %c0_i32_0 = arith.constant 0 : i32
    return %arg0, %c0_i32 : i32, i32
  }
  func.func @transform_1(%arg0: i32) -> (i32, i32) {
    %c0_i32 = arith.constant 0 : i32
    %c0_i32_0 = arith.constant 0 : i32
    %c0_i32_1 = arith.constant 0 : i32
    return %c0_i32, %c0_i32_0 : i32, i32
  }
  func.func @transform_2(%arg0: i32) -> (i32, i32) {
    %c0_i32 = arith.constant 0 : i32
    %c0_i32_0 = arith.constant 0 : i32
    %c0_i32_1 = arith.constant 0 : i32
    return %c0_i32, %c0_i32_0 : i32, i32
  }
  func.func @transform_3(%arg0: i32) -> (i32, i32) {
    %c0_i32 = arith.constant 0 : i32
    %c0_i32_0 = arith.constant 0 : i32
    %c0_i32_1 = arith.constant 0 : i32
    return %c0_i32, %c0_i32_0 : i32, i32
  }
  func.func @transform_4(%arg0: i32) -> (i32, i32) {
    %c0_i32 = arith.constant 0 : i32
    %c0_i32_0 = arith.constant 0 : i32
    %c0_i32_1 = arith.constant 0 : i32
    return %c0_i32, %c0_i32_0 : i32, i32
  }
  func.func @transform_5(%arg0: i32) -> (i32, i32) {
    %c0_i32 = arith.constant 0 : i32
    %c0_i32_0 = arith.constant 0 : i32
    %c0_i32_1 = arith.constant 0 : i32
    return %c0_i32, %c0_i32_0 : i32, i32
  }
  func.func @transform_6(%arg0: i32) -> (i32, i32) {
    %c0_i32 = arith.constant 0 : i32
    %c0_i32_0 = arith.constant 0 : i32
    %c0_i32_1 = arith.constant 0 : i32
    return %c0_i32, %c0_i32_0 : i32, i32
  }
  func.func @transform_7(%arg0: i32) -> (i32, i32) {
    %c0_i32 = arith.constant 0 : i32
    %c0_i32_0 = arith.constant 0 : i32
    %c0_i32_1 = arith.constant 0 : i32
    return %c0_i32, %c0_i32_0 : i32, i32
  }
  func.func @transform_8(%arg0: i32) -> (i32, i32) {
    %c0_i32 = arith.constant 0 : i32
    %c0_i32_0 = arith.constant 0 : i32
    %c0_i32_1 = arith.constant 0 : i32
    return %c0_i32, %c0_i32_0 : i32, i32
  }
  func.func @transform_9(%arg0: i32) -> (i32, i32) {
    %c0_i32 = arith.constant 0 : i32
    %c0_i32_0 = arith.constant 0 : i32
    %c0_i32_1 = arith.constant 0 : i32
    return %c0_i32, %c0_i32_0 : i32, i32
  }
  func.func @transform_10(%arg0: i32) -> (i32, i32) {
    %c0_i32 = arith.constant 0 : i32
    %c0_i32_0 = arith.constant 0 : i32
    return %arg0, %c0_i32 : i32, i32
  }
}

</mosaic_0001>

<llo_original>
// kernel: tpu_custom_call.1
$region0: #{tpu_custom_call.1}
  #allocation0 [shape = 'u32[]', space=smem, size = 0x4, offset = 0x4, fixed_abs, tag = 'smem constant byte address 0x4 - core index']
  #allocation1 [shape = 'u32[144,128]{1,0:T(1,128)}', space=vmem, size = 0x12000, scoped, tag = 'internal scratch']
  %s0 = inlined_call_operand.hbm [shape: f32[8,1024], index: 0, kind: input, shape index: {}]
  %s1 = inlined_call_operand.hbm [shape: bf16[1024,128], index: 1, kind: input, shape index: {}]
  %s2 = inlined_call_operand.hbm [shape: f32[1,128], index: 2, kind: input, shape index: {}]
  %s3 = inlined_call_operand.hbm [shape: f32[1,128], index: 3, kind: input, shape index: {}]
  %s4 = inlined_call_operand.hbm [shape: f32[1,128], index: 4, kind: input, shape index: {}]
  %s5 = inlined_call_operand.vmem [shape: f32[4,128], index: 5, kind: input, shape index: {}]
  %s6 = inlined_call_operand.vmem [shape: f32[4,128], index: 6, kind: input, shape index: {}]
  %s7 = inlined_call_operand.vmem [shape: f32[4,128], index: 7, kind: input, shape index: {}]
  %s8 = inlined_call_operand.hbm [shape: f32[128,128], index: 8, kind: input, shape index: {}]
  %s9 = inlined_call_operand.vmem [shape: f32[1,128], index: 9, kind: input, shape index: {}]
  %s10 = inlined_call_operand.hbm [shape: f32[8,128], index: 10, kind: output, shape index: {}]
  %s11 = sld [smem:[#allocation0]]
  $region74: #{tpu_custom_call.1} parent=0
    _
  %s13 = ssub.s32 1, %s11
  %s14 = scalar_select 0, %s13, %s11
  $region1: #{tpu_custom_call.1} parent=0
    #allocation2 [shape = 'u8[32768]{0}', space=vmem, size = 0x8000, scoped, tag = 'input window, operand 0, single buffered']
    #allocation3 [shape = 's32[1]{0}', space=sflag, size = 0x4, scoped, tag = 'scoped memory for tpu_custom_call.1']
    #allocation4 [shape = 's32[1]{0}', space=sflag, size = 0x4, scoped, tag = 'scoped memory for tpu_custom_call.1']
    #allocation5 [shape = 'u8[262144]{0}', space=vmem, size = 0x40000, scoped, tag = 'input window, operand 1, single buffered']
    #allocation6 [shape = 's32[1]{0}', space=sflag, size = 0x4, scoped, tag = 'scoped memory for tpu_custom_call.1']
    #allocation7 [shape = 'u8[512]{0}', space=vmem, size = 0x400, scoped, tag = 'input window, operand 2, single buffered']
    #allocation8 [shape = 'u8[512]{0}', space=vmem, size = 0x400, scoped, tag = 'input window, operand 3, single buffered']
    #allocation9 [shape = 's32[1]{0}', space=sflag, size = 0x4, scoped, tag = 'scoped memory for tpu_custom_call.1']
    #allocation10 [shape = 'u8[512]{0}', space=vmem, size = 0x400, scoped, tag = 'input window, operand 4, single buffered']
    #allocation11 [shape = 'u8[65536]{0}', space=vmem, size = 0x10000, scoped, tag = 'input window, operand 8, single buffered']
    #allocation12 [shape = 's32[1]{0}', space=sflag, size = 0x4, scoped, tag = 'scoped memory for tpu_custom_call.1']
    #allocation13 [shape = 'u8[4096]{0}', space=vmem, size = 0x1000, scoped, tag = 'output window, operand 0, single buffered']
    %15 = vsyncpa [#allocation3], 0
    %16 = vsyncpa [#allocation6], 0
    %17 = vsyncpa [#allocation9], 0
    %18 = vsyncpa [#allocation12], 0
    %19 = vsyncpa [#allocation4], 0
    // Predicated region
    $region2: #{tpu_custom_call.1} parent=1 // pred_check
      _
    $region3: #{tpu_custom_call.1} parent=1 // pred_check_branch
      %21 = sbr.rel (0) target = $region5
    $region4: #{tpu_custom_call.1} parent=1 // pred_region
      %s23 = ssub.s32 1024, 1024
      %24 = vsyncadd [#allocation3], %s23
      %s26 = sshll.u32 [#allocation2], 4
      %s27 = int_to_ptr.vmem [resolvable:$true] %s26
      %29 = dma.hbm_to_vmem [thread:$0]  %s0, 1024, %s27, [#allocation3]
    $region5: #{tpu_custom_call.1} parent=1 // pred_fallthru
      _
    // Predicated region
    $region6: #{tpu_custom_call.1} parent=1 // pred_check
      _
    $region7: #{tpu_custom_call.1} parent=1 // pred_check_branch
      %31 = sbr.rel (0) target = $region9
    $region8: #{tpu_custom_call.1} parent=1 // pred_region
      %s33 = ssub.s32 8192, 8192
      %34 = vsyncadd [#allocation6], %s33
      %s35 = sshll.u32 [#allocation5], 4
      %s36 = int_to_ptr.vmem [resolvable:$true] %s35
      %41 = dma.hbm_to_vmem [thread:$0]  %s1, 8192, %s36, [#allocation6], 64, 64, 4
    $region9: #{tpu_custom_call.1} parent=1 // pred_fallthru
      _
    // Predicated region
    $region10: #{tpu_custom_call.1} parent=1 // pred_check
      _
    $region11: #{tpu_custom_call.1} parent=1 // pred_check_branch
      %43 = sbr.rel (0) target = $region13
    $region12: #{tpu_custom_call.1} parent=1 // pred_region
      %s45 = ssub.s32 16, 16
      %46 = vsyncadd [#allocation6], %s45
      %s48 = sshll.u32 [#allocation7], 4
      %s49 = int_to_ptr.vmem [resolvable:$true] %s48
      %51 = dma.hbm_to_vmem [thread:$0]  %s2, 16, %s49, [#allocation6]
    $region13: #{tpu_custom_call.1} parent=1 // pred_fallthru
      _
    // Predicated region
    $region14: #{tpu_custom_call.1} parent=1 // pred_check
      _
    $region15: #{tpu_custom_call.1} parent=1 // pred_check_branch
      %53 = sbr.rel (0) target = $region17
    $region16: #{tpu_custom_call.1} parent=1 // pred_region
      %s55 = ssub.s32 16, 16
      %56 = vsyncadd [#allocation9], %s55
      %s58 = sshll.u32 [#allocation8], 4
      %s59 = int_to_ptr.vmem [resolvable:$true] %s58
      %61 = dma.hbm_to_vmem [thread:$0]  %s3, 16, %s59, [#allocation9]
    $region17: #{tpu_custom_call.1} parent=1 // pred_fallthru
      _
    // Predicated region
    $region18: #{tpu_custom_call.1} parent=1 // pred_check
      _
    $region19: #{tpu_custom_call.1} parent=1 // pred_check_branch
      %63 = sbr.rel (0) target = $region21
    $region20: #{tpu_custom_call.1} parent=1 // pred_region
      %s65 = ssub.s32 16, 16
      %66 = vsyncadd [#allocation9], %s65
      %s68 = sshll.u32 [#allocation10], 4
      %s69 = int_to_ptr.vmem [resolvable:$true] %s68
      %71 = dma.hbm_to_vmem [thread:$0]  %s4, 16, %s69, [#allocation9]
    $region21: #{tpu_custom_call.1} parent=1 // pred_fallthru
      _
    // Predicated region
    $region22: #{tpu_custom_call.1} parent=1 // pred_check
      _
    $region23: #{tpu_custom_call.1} parent=1 // pred_check_branch
      %73 = sbr.rel (0) target = $region25
    $region24: #{tpu_custom_call.1} parent=1 // pred_region
      _
    $region25: #{tpu_custom_call.1} parent=1 // pred_fallthru
      _
    // Predicated region
    $region26: #{tpu_custom_call.1} parent=1 // pred_check
      _
    $region27: #{tpu_custom_call.1} parent=1 // pred_check_branch
      %75 = sbr.rel (0) target = $region29
    $region28: #{tpu_custom_call.1} parent=1 // pred_region
      _
    $region29: #{tpu_custom_call.1} parent=1 // pred_fallthru
      _
    // Predicated region
    $region30: #{tpu_custom_call.1} parent=1 // pred_check
      _
    $region31: #{tpu_custom_call.1} parent=1 // pred_check_branch
      %77 = sbr.rel (0) target = $region33
    $region32: #{tpu_custom_call.1} parent=1 // pred_region
      _
    $region33: #{tpu_custom_call.1} parent=1 // pred_fallthru
      _
    // Predicated region
    $region34: #{tpu_custom_call.1} parent=1 // pred_check
      _
    $region35: #{tpu_custom_call.1} parent=1 // pred_check_branch
      %79 = sbr.rel (0) target = $region37
    $region36: #{tpu_custom_call.1} parent=1 // pred_region
      %s81 = ssub.s32 2048, 2048
      %82 = vsyncadd [#allocation12], %s81
      %s83 = sshll.u32 [#allocation11], 4
      %s84 = int_to_ptr.vmem [resolvable:$true] %s83
      %89 = dma.hbm_to_vmem [thread:$0]  %s8, 2048, %s84, [#allocation12], 128, 128, 8
    $region37: #{tpu_custom_call.1} parent=1 // pred_fallthru
      _
    // Predicated region
    $region38: #{tpu_custom_call.1} parent=1 // pred_check
      _
    $region39: #{tpu_custom_call.1} parent=1 // pred_check_branch
      %91 = sbr.rel (0) target = $region41
    $region40: #{tpu_custom_call.1} parent=1 // pred_region
      _
    $region41: #{tpu_custom_call.1} parent=1 // pred_fallthru
      _
    // Predicated region
    $region42: #{tpu_custom_call.1} parent=1 // pred_check
      _
    $region43: #{tpu_custom_call.1} parent=1 // pred_check_branch
      %93 = sbr.rel (0) target = $region45
    $region44: #{tpu_custom_call.1} parent=1 // pred_region
      %94 = dma.done [#allocation3], 1024
    $region45: #{tpu_custom_call.1} parent=1 // pred_fallthru
      _
    // Predicated region
    $region46: #{tpu_custom_call.1} parent=1 // pred_check
      _
    $region47: #{tpu_custom_call.1} parent=1 // pred_check_branch
      %96 = sbr.rel (0) target = $region49
    $region48: #{tpu_custom_call.1} parent=1 // pred_region
      %97 = dma.done [#allocation6], 8192
    $region49: #{tpu_custom_call.1} parent=1 // pred_fallthru
      _
    // Predicated region
    $region50: #{tpu_custom_call.1} parent=1 // pred_check
      _
    $region51: #{tpu_custom_call.1} parent=1 // pred_check_branch
      %99 = sbr.rel (0) target = $region53
    $region52: #{tpu_custom_call.1} parent=1 // pred_region
      %100 = dma.done [#allocation6], 16
    $region53: #{tpu_custom_call.1} parent=1 // pred_fallthru
      _
    // Predicated region
    $region54: #{tpu_custom_call.1} parent=1 // pred_check
      _
    $region55: #{tpu_custom_call.1} parent=1 // pred_check_branch
      %102 = sbr.rel (0) target = $region57
    $region56: #{tpu_custom_call.1} parent=1 // pred_region
      %103 = dma.done [#allocation9], 16
    $region57: #{tpu_custom_call.1} parent=1 // pred_fallthru
      _
    // Predicated region
    $region58: #{tpu_custom_call.1} parent=1 // pred_check
      _
    $region59: #{tpu_custom_call.1} parent=1 // pred_check_branch
      %105 = sbr.rel (0) target = $region61
    $region60: #{tpu_custom_call.1} parent=1 // pred_region
      %106 = dma.done [#allocation9], 16
    $region61: #{tpu_custom_call.1} parent=1 // pred_fallthru
      _
    // Predicated region
    $region62: #{tpu_custom_call.1} parent=1 // pred_check
      _
    $region63: #{tpu_custom_call.1} parent=1 // pred_check_branch
      %108 = sbr.rel (0) target = $region65
    $region64: #{tpu_custom_call.1} parent=1 // pred_region
      %109 = dma.done [#allocation12], 2048
    $region65: #{tpu_custom_call.1} parent=1 // pred_fallthru
      _
    %v110 = vld [vmem:[#allocation5] sm:$0xf]
    %v111 = vld [vmem:[#allocation5 + $0x4] sm:$0xf]
    %v112 = vld [vmem:[#allocation5 + $0x8] sm:$0xf]
    %v113 = vld [vmem:[#allocation5 + $0xc] sm:$0xf]
    %v114 = vld [vmem:[#allocation5 + $0x10] sm:$0xf]
    %v115 = vld [vmem:[#allocation5 + $0x14] sm:$0xf]
    %v116 = vld [vmem:[#allocation5 + $0x18] sm:$0xf]
    %v117 = vld [vmem:[#allocation5 + $0x1c] sm:$0xf]
    %v118 = vld [vmem:[#allocation5 + $0x20] sm:$0xf]
    %v119 = vld [vmem:[#allocation5 + $0x24] sm:$0xf]
    %v120 = vld [vmem:[#allocation5 + $0x28] sm:$0xf]
    %v121 = vld [vmem:[#allocation5 + $0x2c] sm:$0xf]
    %v122 = vld [vmem:[#allocation5 + $0x30] sm:$0xf]
    %v123 = vld [vmem:[#allocation5 + $0x34] sm:$0xf]
    %v124 = vld [vmem:[#allocation5 + $0x38] sm:$0xf]
    %v125 = vld [vmem:[#allocation5 + $0x3c] sm:$0xf]
    %v126 = vld [vmem:[#allocation5 + $0x40] sm:$0xf]
    %v127 = vld [vmem:[#allocation5 + $0x44] sm:$0xf]
    %v128 = vld [vmem:[#allocation5 + $0x48] sm:$0xf]
    %v129 = vld [vmem:[#allocation5 + $0x4c] sm:$0xf]
    %v130 = vld [vmem:[#allocation5 + $0x50] sm:$0xf]
    %v131 = vld [vmem:[#allocation5 + $0x54] sm:$0xf]
    %v132 = vld [vmem:[#allocation5 + $0x58] sm:$0xf]
    %v133 = vld [vmem:[#allocation5 + $0x5c] sm:$0xf]
    %v134 = vld [vmem:[#allocation5 + $0x60] sm:$0xf]
    %v135 = vld [vmem:[#allocation5 + $0x64] sm:$0xf]
    %v136 = vld [vmem:[#allocation5 + $0x68] sm:$0xf]
    %v137 = vld [vmem:[#allocation5 + $0x6c] sm:$0xf]
    %v138 = vld [vmem:[#allocation5 + $0x70] sm:$0xf]
    %v139 = vld [vmem:[#allocation5 + $0x74] sm:$0xf]
    %v140 = vld [vmem:[#allocation5 + $0x78] sm:$0xf]
    %v141 = vld [vmem:[#allocation5 + $0x7c] sm:$0xf]
    %v142 = vld [vmem:[#allocation5 + $0x80] sm:$0xf]
    %v143 = vld [vmem:[#allocation5 + $0x84] sm:$0xf]
    %v144 = vld [vmem:[#allocation5 + $0x88] sm:$0xf]
    %v145 = vld [vmem:[#allocation5 + $0x8c] sm:$0xf]
    %v146 = vld [vmem:[#allocation5 + $0x90] sm:$0xf]
    %v147 = vld [vmem:[#allocation5 + $0x94] sm:$0xf]
    %v148 = vld [vmem:[#allocation5 + $0x98] sm:$0xf]
    %v149 = vld [vmem:[#allocation5 + $0x9c] sm:$0xf]
    %v150 = vld [vmem:[#allocation5 + $0xa0] sm:$0xf]
    %v151 = vld [vmem:[#allocation5 + $0xa4] sm:$0xf]
    %v152 = vld [vmem:[#allocation5 + $0xa8] sm:$0xf]
    %v153 = vld [vmem:[#allocation5 + $0xac] sm:$0xf]
    %v154 = vld [vmem:[#allocation5 + $0xb0] sm:$0xf]
    %v155 = vld [vmem:[#allocation5 + $0xb4] sm:$0xf]
    %v156 = vld [vmem:[#allocation5 + $0xb8] sm:$0xf]
    %v157 = vld [vmem:[#allocation5 + $0xbc] sm:$0xf]
    %v158 = vld [vmem:[#allocation5 + $0xc0] sm:$0xf]
    %v159 = vld [vmem:[#allocation5 + $0xc4] sm:$0xf]
    %v160 = vld [vmem:[#allocation5 + $0xc8] sm:$0xf]
    %v161 = vld [vmem:[#allocation5 + $0xcc] sm:$0xf]
    %v162 = vld [vmem:[#allocation5 + $0xd0] sm:$0xf]
    %v163 = vld [vmem:[#allocation5 + $0xd4] sm:$0xf]
    %v164 = vld [vmem:[#allocation5 + $0xd8] sm:$0xf]
    %v165 = vld [vmem:[#allocation5 + $0xdc] sm:$0xf]
    %v166 = vld [vmem:[#allocation5 + $0xe0] sm:$0xf]
    %v167 = vld [vmem:[#allocation5 + $0xe4] sm:$0xf]
    %v168 = vld [vmem:[#allocation5 + $0xe8] sm:$0xf]
    %v169 = vld [vmem:[#allocation5 + $0xec] sm:$0xf]
    %v170 = vld [vmem:[#allocation5 + $0xf0] sm:$0xf]
    %v171 = vld [vmem:[#allocation5 + $0xf4] sm:$0xf]
    %v172 = vld [vmem:[#allocation5 + $0xf8] sm:$0xf]
    %v173 = vld [vmem:[#allocation5 + $0xfc] sm:$0xf]
    %v174 = vld [vmem:[#allocation5 + $0x100] sm:$0xf]
    %v175 = vld [vmem:[#allocation5 + $0x104] sm:$0xf]
    %v176 = vld [vmem:[#allocation5 + $0x108] sm:$0xf]
    %v177 = vld [vmem:[#allocation5 + $0x10c] sm:$0xf]
    %v178 = vld [vmem:[#allocation5 + $0x110] sm:$0xf]
    %v179 = vld [vmem:[#allocation5 + $0x114] sm:$0xf]
    %v180 = vld [vmem:[#allocation5 + $0x118] sm:$0xf]
    %v181 = vld [vmem:[#allocation5 + $0x11c] sm:$0xf]
    %v182 = vld [vmem:[#allocation5 + $0x120] sm:$0xf]
    %v183 = vld [vmem:[#allocation5 + $0x124] sm:$0xf]
    %v184 = vld [vmem:[#allocation5 + $0x128] sm:$0xf]
    %v185 = vld [vmem:[#allocation5 + $0x12c] sm:$0xf]
    %v186 = vld [vmem:[#allocation5 + $0x130] sm:$0xf]
    %v187 = vld [vmem:[#allocation5 + $0x134] sm:$0xf]
    %v188 = vld [vmem:[#allocation5 + $0x138] sm:$0xf]
    %v189 = vld [vmem:[#allocation5 + $0x13c] sm:$0xf]
    %v190 = vld [vmem:[#allocation5 + $0x140] sm:$0xf]
    %v191 = vld [vmem:[#allocation5 + $0x144] sm:$0xf]
    %v192 = vld [vmem:[#allocation5 + $0x148] sm:$0xf]
    %v193 = vld [vmem:[#allocation5 + $0x14c] sm:$0xf]
    %v194 = vld [vmem:[#allocation5 + $0x150] sm:$0xf]
    %v195 = vld [vmem:[#allocation5 + $0x154] sm:$0xf]
    %v196 = vld [vmem:[#allocation5 + $0x158] sm:$0xf]
    %v197 = vld [vmem:[#allocation5 + $0x15c] sm:$0xf]
    %v198 = vld [vmem:[#allocation5 + $0x160] sm:$0xf]
    %v199 = vld [vmem:[#allocation5 + $0x164] sm:$0xf]
    %v200 = vld [vmem:[#allocation5 + $0x168] sm:$0xf]
    %v201 = vld [vmem:[#allocation5 + $0x16c] sm:$0xf]
    %v202 = vld [vmem:[#allocation5 + $0x170] sm:$0xf]
    %v203 = vld [vmem:[#allocation5 + $0x174] sm:$0xf]
    %v204 = vld [vmem:[#allocation5 + $0x178] sm:$0xf]
    %v205 = vld [vmem:[#allocation5 + $0x17c] sm:$0xf]
    %v206 = vld [vmem:[#allocation5 + $0x180] sm:$0xf]
    %v207 = vld [vmem:[#allocation5 + $0x184] sm:$0xf]
    %v208 = vld [vmem:[#allocation5 + $0x188] sm:$0xf]
    %v209 = vld [vmem:[#allocation5 + $0x18c] sm:$0xf]
    %v210 = vld [vmem:[#allocation5 + $0x190] sm:$0xf]
    %v211 = vld [vmem:[#allocation5 + $0x194] sm:$0xf]
    %v212 = vld [vmem:[#allocation5 + $0x198] sm:$0xf]
    %v213 = vld [vmem:[#allocation5 + $0x19c] sm:$0xf]
    %v214 = vld [vmem:[#allocation5 + $0x1a0] sm:$0xf]
    %v215 = vld [vmem:[#allocation5 + $0x1a4] sm:$0xf]
    %v216 = vld [vmem:[#allocation5 + $0x1a8] sm:$0xf]
    %v217 = vld [vmem:[#allocation5 + $0x1ac] sm:$0xf]
    %v218 = vld [vmem:[#allocation5 + $0x1b0] sm:$0xf]
    %v219 = vld [vmem:[#allocation5 + $0x1b4] sm:$0xf]
    %v220 = vld [vmem:[#allocation5 + $0x1b8] sm:$0xf]
    %v221 = vld [vmem:[#allocation5 + $0x1bc] sm:$0xf]
    %v222 = vld [vmem:[#allocation5 + $0x1c0] sm:$0xf]
    %v223 = vld [vmem:[#allocation5 + $0x1c4] sm:$0xf]
    %v224 = vld [vmem:[#allocation5 + $0x1c8] sm:$0xf]
    %v225 = vld [vmem:[#allocation5 + $0x1cc] sm:$0xf]
    %v226 = vld [vmem:[#allocation5 + $0x1d0] sm:$0xf]
    %v227 = vld [vmem:[#allocation5 + $0x1d4] sm:$0xf]
    %v228 = vld [vmem:[#allocation5 + $0x1d8] sm:$0xf]
    %v229 = vld [vmem:[#allocation5 + $0x1dc] sm:$0xf]
    %v230 = vld [vmem:[#allocation5 + $0x1e0] sm:$0xf]
    %v231 = vld [vmem:[#allocation5 + $0x1e4] sm:$0xf]
    %v232 = vld [vmem:[#allocation5 + $0x1e8] sm:$0xf]
    %v233 = vld [vmem:[#allocation5 + $0x1ec] sm:$0xf]
    %v234 = vld [vmem:[#allocation5 + $0x1f0] sm:$0xf]
    %v235 = vld [vmem:[#allocation5 + $0x1f4] sm:$0xf]
    %v236 = vld [vmem:[#allocation5 + $0x1f8] sm:$0xf]
    %v237 = vld [vmem:[#allocation5 + $0x1fc] sm:$0xf]
    %v238 = vunpack.c.l.bf16 %v110
    %v239 = vunpack.c.l.bf16 %v111
    %v240 = vunpack.c.l.bf16 %v112
    %v241 = vunpack.c.l.bf16 %v113
    %v242 = vunpack.c.l.bf16 %v114
    %v243 = vunpack.c.l.bf16 %v115
    %v244 = vunpack.c.l.bf16 %v116
    %v245 = vunpack.c.l.bf16 %v117
    %v246 = vunpack.c.l.bf16 %v118
    %v247 = vunpack.c.l.bf16 %v119
    %v248 = vunpack.c.l.bf16 %v120
    %v249 = vunpack.c.l.bf16 %v121
    %v250 = vunpack.c.l.bf16 %v122
    %v251 = vunpack.c.l.bf16 %v123
    %v252 = vunpack.c.l.bf16 %v124
    %v253 = vunpack.c.l.bf16 %v125
    %v254 = vunpack.c.l.bf16 %v126
    %v255 = vunpack.c.l.bf16 %v127
    %v256 = vunpack.c.l.bf16 %v128
    %v257 = vunpack.c.l.bf16 %v129
    %v258 = vunpack.c.l.bf16 %v130
    %v259 = vunpack.c.l.bf16 %v131
    %v260 = vunpack.c.l.bf16 %v132
    %v261 = vunpack.c.l.bf16 %v133
    %v262 = vunpack.c.l.bf16 %v134
    %v263 = vunpack.c.l.bf16 %v135
    %v264 = vunpack.c.l.bf16 %v136
    %v265 = vunpack.c.l.bf16 %v137
    %v266 = vunpack.c.l.bf16 %v138
    %v267 = vunpack.c.l.bf16 %v139
    %v268 = vunpack.c.l.bf16 %v140
    %v269 = vunpack.c.l.bf16 %v141
    %v270 = vunpack.c.l.bf16 %v142
    %v271 = vunpack.c.l.bf16 %v143
    %v272 = vunpack.c.l.bf16 %v144
    %v273 = vunpack.c.l.bf16 %v145
    %v274 = vunpack.c.l.bf16 %v146
    %v275 = vunpack.c.l.bf16 %v147
    %v276 = vunpack.c.l.bf16 %v148
    %v277 = vunpack.c.l.bf16 %v149
    %v278 = vunpack.c.l.bf16 %v150
    %v279 = vunpack.c.l.bf16 %v151
    %v280 = vunpack.c.l.bf16 %v152
    %v281 = vunpack.c.l.bf16 %v153
    %v282 = vunpack.c.l.bf16 %v154
    %v283 = vunpack.c.l.bf16 %v155
    %v284 = vunpack.c.l.bf16 %v156
    %v285 = vunpack.c.l.bf16 %v157
    %v286 = vunpack.c.l.bf16 %v158
    %v287 = vunpack.c.l.bf16 %v159
    %v288 = vunpack.c.l.bf16 %v160
    %v289 = vunpack.c.l.bf16 %v161
    %v290 = vunpack.c.l.bf16 %v162
    %v291 = vunpack.c.l.bf16 %v163
    %v292 = vunpack.c.l.bf16 %v164
    %v293 = vunpack.c.l.bf16 %v165
    %v294 = vunpack.c.l.bf16 %v166
    %v295 = vunpack.c.l.bf16 %v167
    %v296 = vunpack.c.l.bf16 %v168
    %v297 = vunpack.c.l.bf16 %v169
    %v298 = vunpack.c.l.bf16 %v170
    %v299 = vunpack.c.l.bf16 %v171
    %v300 = vunpack.c.l.bf16 %v172
    %v301 = vunpack.c.l.bf16 %v173
    %v302 = vunpack.c.l.bf16 %v174
    %v303 = vunpack.c.l.bf16 %v175
    %v304 = vunpack.c.l.bf16 %v176
    %v305 = vunpack.c.l.bf16 %v177
    %v306 = vunpack.c.l.bf16 %v178
    %v307 = vunpack.c.l.bf16 %v179
    %v308 = vunpack.c.l.bf16 %v180
    %v309 = vunpack.c.l.bf16 %v181
    %v310 = vunpack.c.l.bf16 %v182
    %v311 = vunpack.c.l.bf16 %v183
    %v312 = vunpack.c.l.bf16 %v184
    %v313 = vunpack.c.l.bf16 %v185
    %v314 = vunpack.c.l.bf16 %v186
    %v315 = vunpack.c.l.bf16 %v187
    %v316 = vunpack.c.l.bf16 %v188
    %v317 = vunpack.c.l.bf16 %v189
    %v318 = vunpack.c.l.bf16 %v190
    %v319 = vunpack.c.l.bf16 %v191
    %v320 = vunpack.c.l.bf16 %v192
    %v321 = vunpack.c.l.bf16 %v193
    %v322 = vunpack.c.l.bf16 %v194
    %v323 = vunpack.c.l.bf16 %v195
    %v324 = vunpack.c.l.bf16 %v196
    %v325 = vunpack.c.l.bf16 %v197
    %v326 = vunpack.c.l.bf16 %v198
    %v327 = vunpack.c.l.bf16 %v199
    %v328 = vunpack.c.l.bf16 %v200
    %v329 = vunpack.c.l.bf16 %v201
    %v330 = vunpack.c.l.bf16 %v202
    %v331 = vunpack.c.l.bf16 %v203
    %v332 = vunpack.c.l.bf16 %v204
    %v333 = vunpack.c.l.bf16 %v205
    %v334 = vunpack.c.l.bf16 %v206
    %v335 = vunpack.c.l.bf16 %v207
    %v336 = vunpack.c.l.bf16 %v208
    %v337 = vunpack.c.l.bf16 %v209
    %v338 = vunpack.c.l.bf16 %v210
    %v339 = vunpack.c.l.bf16 %v211
    %v340 = vunpack.c.l.bf16 %v212
    %v341 = vunpack.c.l.bf16 %v213
    %v342 = vunpack.c.l.bf16 %v214
    %v343 = vunpack.c.l.bf16 %v215
    %v344 = vunpack.c.l.bf16 %v216
    %v345 = vunpack.c.l.bf16 %v217
    %v346 = vunpack.c.l.bf16 %v218
    %v347 = vunpack.c.l.bf16 %v219
    %v348 = vunpack.c.l.bf16 %v220
    %v349 = vunpack.c.l.bf16 %v221
    %v350 = vunpack.c.l.bf16 %v222
    %v351 = vunpack.c.l.bf16 %v223
    %v352 = vunpack.c.l.bf16 %v224
    %v353 = vunpack.c.l.bf16 %v225
    %v354 = vunpack.c.l.bf16 %v226
    %v355 = vunpack.c.l.bf16 %v227
    %v356 = vunpack.c.l.bf16 %v228
    %v357 = vunpack.c.l.bf16 %v229
    %v358 = vunpack.c.l.bf16 %v230
    %v359 = vunpack.c.l.bf16 %v231
    %v360 = vunpack.c.l.bf16 %v232
    %v361 = vunpack.c.l.bf16 %v233
    %v362 = vunpack.c.l.bf16 %v234
    %v363 = vunpack.c.l.bf16 %v235
    %v364 = vunpack.c.l.bf16 %v236
    %v365 = vunpack.c.l.bf16 %v237
    %v366 = vld [vmem:[#allocation2] sm:$0xff]
    %v367 = vld [vmem:[#allocation2 + $0x8] sm:$0xff]
    %v368 = vld [vmem:[#allocation2 + $0x10] sm:$0xff]
    %v369 = vld [vmem:[#allocation2 + $0x18] sm:$0xff]
    %v370 = vld [vmem:[#allocation2 + $0x20] sm:$0xff]
    %v371 = vld [vmem:[#allocation2 + $0x28] sm:$0xff]
    %v372 = vld [vmem:[#allocation2 + $0x30] sm:$0xff]
    %v373 = vld [vmem:[#allocation2 + $0x38] sm:$0xff]
    %v374 = vld [vmem:[#allocation7] sm:$0x1]
    %v376 = vlaneseq
    %v377 = vshrl.u32 %v376, 7
    %v378 = vsub.s32 0, %v377
    %v379 = vrot.slane %v374, %v378
    %381 = vmatprep.subr.mxu0 0.0
    %382 = vmatpush1.msra.mxu0 %v253
    %383 = vmatprep.subr.mxu0 0.0
    %384 = vmatpush1.msra.mxu0 %v252
    %385 = vmatprep.subr.mxu0 0.0
    %386 = vmatpush1.msra.mxu0 %v251
    %387 = vmatprep.subr.mxu0 0.0
    %388 = vmatpush1.msra.mxu0 %v250
    %389 = vmatprep.subr.mxu0 0.0
    %390 = vmatpush1.msra.mxu0 %v249
    %391 = vmatprep.subr.mxu0 0.0
    %392 = vmatpush1.msra.mxu0 %v248
    %393 = vmatprep.subr.mxu0 0.0
    %394 = vmatpush1.msra.mxu0 %v247
    %395 = vmatprep.subr.mxu0 0.0
    %396 = vmatpush1.msra.mxu0 %v246
    %397 = vmatprep.subr.mxu0 0.0
    %398 = vmatpush1.msra.mxu0 %v245
    %399 = vmatprep.subr.mxu0 0.0
    %400 = vmatpush1.msra.mxu0 %v244
    %401 = vmatprep.subr.mxu0 0.0
    %402 = vmatpush1.msra.mxu0 %v243
    %403 = vmatprep.subr.mxu0 0.0
    %404 = vmatpush1.msra.mxu0 %v242
    %405 = vmatprep.subr.mxu0 0.0
    %406 = vmatpush1.msra.mxu0 %v241
    %407 = vmatprep.subr.mxu0 0.0
    %408 = vmatpush1.msra.mxu0 %v240
    %409 = vmatprep.subr.mxu0 0.0
    %410 = vmatpush1.msra.mxu0 %v239
    %411 = vmatprep.subr.mxu0 0.0
    %412 = vmatpush1.msra.mxu0 %v238
    %413 = vmatprep.subr.mxu0 0.0
    %414 = vmatpush2.msra.mxu0 %v269
    %415 = vmatprep.subr.mxu0 0.0
    %416 = vmatpush2.msra.mxu0 %v268
    %417 = vmatprep.subr.mxu0 0.0
    %418 = vmatpush2.msra.mxu0 %v267
    %419 = vmatprep.subr.mxu0 0.0
    %420 = vmatpush2.msra.mxu0 %v266
    %421 = vmatprep.subr.mxu0 0.0
    %422 = vmatpush2.msra.mxu0 %v265
    %423 = vmatprep.subr.mxu0 0.0
    %424 = vmatpush2.msra.mxu0 %v264
    %425 = vmatprep.subr.mxu0 0.0
    %426 = vmatpush2.msra.mxu0 %v263
    %427 = vmatprep.subr.mxu0 0.0
    %428 = vmatpush2.msra.mxu0 %v262
    %429 = vmatprep.subr.mxu0 0.0
    %430 = vmatpush2.msra.mxu0 %v261
    %431 = vmatprep.subr.mxu0 0.0
    %432 = vmatpush2.msra.mxu0 %v260
    %433 = vmatprep.subr.mxu0 0.0
    %434 = vmatpush2.msra.mxu0 %v259
    %435 = vmatprep.subr.mxu0 0.0
    %436 = vmatpush2.msra.mxu0 %v258
    %437 = vmatprep.subr.mxu0 0.0
    %438 = vmatpush2.msra.mxu0 %v257
    %439 = vmatprep.subr.mxu0 0.0
    %440 = vmatpush2.msra.mxu0 %v256
    %441 = vmatprep.subr.mxu0 0.0
    %442 = vmatpush2.msra.mxu0 %v255
    %443 = vmatprep.subr.mxu0 0.0
    %444 = vmatpush2.msra.mxu0 %v254
    %445 = vmatprep.mubr.f32.mxu0 %v367
    %446 = vmatmul.mubr.f32.gmra.mxu0 %v366
    %v447 = vpop.f32.mrf.mxu0
    %v448 = vadd.f32 %v379, %v447
    %v449 = vpop.f32.mrf.mxu0
    %450 = vdwg.mxu0
    %451 = vmatprep.subr.mxu0 0.0
    %452 = vmatpush1.msra.mxu0 %v285
    %453 = vmatprep.subr.mxu0 0.0
    %454 = vmatpush1.msra.mxu0 %v284
    %455 = vmatprep.subr.mxu0 0.0
    %456 = vmatpush1.msra.mxu0 %v283
    %457 = vmatprep.subr.mxu0 0.0
    %458 = vmatpush1.msra.mxu0 %v282
    %459 = vmatprep.subr.mxu0 0.0
    %460 = vmatpush1.msra.mxu0 %v281
    %461 = vmatprep.subr.mxu0 0.0
    %462 = vmatpush1.msra.mxu0 %v280
    %463 = vmatprep.subr.mxu0 0.0
    %464 = vmatpush1.msra.mxu0 %v279
    %465 = vmatprep.subr.mxu0 0.0
    %466 = vmatpush1.msra.mxu0 %v278
    %467 = vmatprep.subr.mxu0 0.0
    %468 = vmatpush1.msra.mxu0 %v277
    %469 = vmatprep.subr.mxu0 0.0
    %470 = vmatpush1.msra.mxu0 %v276
    %471 = vmatprep.subr.mxu0 0.0
    %472 = vmatpush1.msra.mxu0 %v275
    %473 = vmatprep.subr.mxu0 0.0
    %474 = vmatpush1.msra.mxu0 %v274
    %475 = vmatprep.subr.mxu0 0.0
    %476 = vmatpush1.msra.mxu0 %v273
    %477 = vmatprep.subr.mxu0 0.0
    %478 = vmatpush1.msra.mxu0 %v272
    %479 = vmatprep.subr.mxu0 0.0
    %480 = vmatpush1.msra.mxu0 %v271
    %481 = vmatprep.subr.mxu0 0.0
    %482 = vmatpush1.msra.mxu0 %v270
    %483 = vmatprep.subr.mxu0 0.0
    %484 = vmatpush2.msra.mxu0 %v301
    %485 = vmatprep.subr.mxu0 0.0
    %486 = vmatpush2.msra.mxu0 %v300
    %487 = vmatprep.subr.mxu0 0.0
    %488 = vmatpush2.msra.mxu0 %v299
    %489 = vmatprep.subr.mxu0 0.0
    %490 = vmatpush2.msra.mxu0 %v298
    %491 = vmatprep.subr.mxu0 0.0
    %492 = vmatpush2.msra.mxu0 %v297
    %493 = vmatprep.subr.mxu0 0.0
    %494 = vmatpush2.msra.mxu0 %v296
    %495 = vmatprep.subr.mxu0 0.0
    %496 = vmatpush2.msra.mxu0 %v295
    %497 = vmatprep.subr.mxu0 0.0
    %498 = vmatpush2.msra.mxu0 %v294
    %499 = vmatprep.subr.mxu0 0.0
    %500 = vmatpush2.msra.mxu0 %v293
    %501 = vmatprep.subr.mxu0 0.0
    %502 = vmatpush2.msra.mxu0 %v292
    %503 = vmatprep.subr.mxu0 0.0
    %504 = vmatpush2.msra.mxu0 %v291
    %505 = vmatprep.subr.mxu0 0.0
    %506 = vmatpush2.msra.mxu0 %v290
    %507 = vmatprep.subr.mxu0 0.0
    %508 = vmatpush2.msra.mxu0 %v289
    %509 = vmatprep.subr.mxu0 0.0
    %510 = vmatpush2.msra.mxu0 %v288
    %511 = vmatprep.subr.mxu0 0.0
    %512 = vmatpush2.msra.mxu0 %v287
    %513 = vmatprep.subr.mxu0 0.0
    %514 = vmatpush2.msra.mxu0 %v286
    %515 = vmatprep.mubr.f32.mxu0 %v369
    %516 = vmatmul.mubr.f32.gmra.mxu0 %v368
    %v517 = vpop.f32.mrf.mxu0
    %v518 = vadd.f32 %v448, %v517
    %v519 = vpop.f32.mrf.mxu0
    %520 = vdwg.mxu0
    %521 = vmatprep.subr.mxu0 0.0
    %522 = vmatpush1.msra.mxu0 %v317
    %523 = vmatprep.subr.mxu0 0.0
    %524 = vmatpush1.msra.mxu0 %v316
    %525 = vmatprep.subr.mxu0 0.0
    %526 = vmatpush1.msra.mxu0 %v315
    %527 = vmatprep.subr.mxu0 0.0
    %528 = vmatpush1.msra.mxu0 %v314
    %529 = vmatprep.subr.mxu0 0.0
    %530 = vmatpush1.msra.mxu0 %v313
    %531 = vmatprep.subr.mxu0 0.0
    %532 = vmatpush1.msra.mxu0 %v312
    %533 = vmatprep.subr.mxu0 0.0
    %534 = vmatpush1.msra.mxu0 %v311
    %535 = vmatprep.subr.mxu0 0.0
    %536 = vmatpush1.msra.mxu0 %v310
    %537 = vmatprep.subr.mxu0 0.0
    %538 = vmatpush1.msra.mxu0 %v309
    %539 = vmatprep.subr.mxu0 0.0
    %540 = vmatpush1.msra.mxu0 %v308
    %541 = vmatprep.subr.mxu0 0.0
    %542 = vmatpush1.msra.mxu0 %v307
    %543 = vmatprep.subr.mxu0 0.0
    %544 = vmatpush1.msra.mxu0 %v306
    %545 = vmatprep.subr.mxu0 0.0
    %546 = vmatpush1.msra.mxu0 %v305
    %547 = vmatprep.subr.mxu0 0.0
    %548 = vmatpush1.msra.mxu0 %v304
    %549 = vmatprep.subr.mxu0 0.0
    %550 = vmatpush1.msra.mxu0 %v303
    %551 = vmatprep.subr.mxu0 0.0
    %552 = vmatpush1.msra.mxu0 %v302
    %553 = vmatprep.subr.mxu0 0.0
    %554 = vmatpush2.msra.mxu0 %v333
    %555 = vmatprep.subr.mxu0 0.0
    %556 = vmatpush2.msra.mxu0 %v332
    %557 = vmatprep.subr.mxu0 0.0
    %558 = vmatpush2.msra.mxu0 %v331
    %559 = vmatprep.subr.mxu0 0.0
    %560 = vmatpush2.msra.mxu0 %v330
    %561 = vmatprep.subr.mxu0 0.0
    %562 = vmatpush2.msra.mxu0 %v329
    %563 = vmatprep.subr.mxu0 0.0
    %564 = vmatpush2.msra.mxu0 %v328
    %565 = vmatprep.subr.mxu0 0.0
    %566 = vmatpush2.msra.mxu0 %v327
    %567 = vmatprep.subr.mxu0 0.0
    %568 = vmatpush2.msra.mxu0 %v326
    %569 = vmatprep.subr.mxu0 0.0
    %570 = vmatpush2.msra.mxu0 %v325
    %571 = vmatprep.subr.mxu0 0.0
    %572 = vmatpush2.msra.mxu0 %v324
    %573 = vmatprep.subr.mxu0 0.0
    %574 = vmatpush2.msra.mxu0 %v323
    %575 = vmatprep.subr.mxu0 0.0
    %576 = vmatpush2.msra.mxu0 %v322
    %577 = vmatprep.subr.mxu0 0.0
    %578 = vmatpush2.msra.mxu0 %v321
    %579 = vmatprep.subr.mxu0 0.0
    %580 = vmatpush2.msra.mxu0 %v320
    %581 = vmatprep.subr.mxu0 0.0
    %582 = vmatpush2.msra.mxu0 %v319
    %583 = vmatprep.subr.mxu0 0.0
    %584 = vmatpush2.msra.mxu0 %v318
    %585 = vmatprep.mubr.f32.mxu0 %v371
    %586 = vmatmul.mubr.f32.gmra.mxu0 %v370
    %v587 = vpop.f32.mrf.mxu0
    %v588 = vadd.f32 %v518, %v587
    %v589 = vpop.f32.mrf.mxu0
    %590 = vdwg.mxu0
    %591 = vmatprep.subr.mxu0 0.0
    %592 = vmatpush1.msra.mxu0 %v349
    %593 = vmatprep.subr.mxu0 0.0
    %594 = vmatpush1.msra.mxu0 %v348
    %595 = vmatprep.subr.mxu0 0.0
    %596 = vmatpush1.msra.mxu0 %v347
    %597 = vmatprep.subr.mxu0 0.0
    %598 = vmatpush1.msra.mxu0 %v346
    %599 = vmatprep.subr.mxu0 0.0
    %600 = vmatpush1.msra.mxu0 %v345
    %601 = vmatprep.subr.mxu0 0.0
    %602 = vmatpush1.msra.mxu0 %v344
    %603 = vmatprep.subr.mxu0 0.0
    %604 = vmatpush1.msra.mxu0 %v343
    %605 = vmatprep.subr.mxu0 0.0
    %606 = vmatpush1.msra.mxu0 %v342
    %607 = vmatprep.subr.mxu0 0.0
    %608 = vmatpush1.msra.mxu0 %v341
    %609 = vmatprep.subr.mxu0 0.0
    %610 = vmatpush1.msra.mxu0 %v340
    %611 = vmatprep.subr.mxu0 0.0
    %612 = vmatpush1.msra.mxu0 %v339
    %613 = vmatprep.subr.mxu0 0.0
    %614 = vmatpush1.msra.mxu0 %v338
    %615 = vmatprep.subr.mxu0 0.0
    %616 = vmatpush1.msra.mxu0 %v337
    %617 = vmatprep.subr.mxu0 0.0
    %618 = vmatpush1.msra.mxu0 %v336
    %619 = vmatprep.subr.mxu0 0.0
    %620 = vmatpush1.msra.mxu0 %v335
    %621 = vmatprep.subr.mxu0 0.0
    %622 = vmatpush1.msra.mxu0 %v334
    %623 = vmatprep.subr.mxu0 0.0
    %624 = vmatpush2.msra.mxu0 %v365
    %625 = vmatprep.subr.mxu0 0.0
    %626 = vmatpush2.msra.mxu0 %v364
    %627 = vmatprep.subr.mxu0 0.0
    %628 = vmatpush2.msra.mxu0 %v363
    %629 = vmatprep.subr.mxu0 0.0
    %630 = vmatpush2.msra.mxu0 %v362
    %631 = vmatprep.subr.mxu0 0.0
    %632 = vmatpush2.msra.mxu0 %v361
    %633 = vmatprep.subr.mxu0 0.0
    %634 = vmatpush2.msra.mxu0 %v360
    %635 = vmatprep.subr.mxu0 0.0
    %636 = vmatpush2.msra.mxu0 %v359
    %637 = vmatprep.subr.mxu0 0.0
    %638 = vmatpush2.msra.mxu0 %v358
    %639 = vmatprep.subr.mxu0 0.0
    %640 = vmatpush2.msra.mxu0 %v357
    %641 = vmatprep.subr.mxu0 0.0
    %642 = vmatpush2.msra.mxu0 %v356
    %643 = vmatprep.subr.mxu0 0.0
    %644 = vmatpush2.msra.mxu0 %v355
    %645 = vmatprep.subr.mxu0 0.0
    %646 = vmatpush2.msra.mxu0 %v354
    %647 = vmatprep.subr.mxu0 0.0
    %648 = vmatpush2.msra.mxu0 %v353
    %649 = vmatprep.subr.mxu0 0.0
    %650 = vmatpush2.msra.mxu0 %v352
    %651 = vmatprep.subr.mxu0 0.0
    %652 = vmatpush2.msra.mxu0 %v351
    %653 = vmatprep.subr.mxu0 0.0
    %654 = vmatpush2.msra.mxu0 %v350
    %655 = vmatprep.mubr.f32.mxu0 %v373
    %656 = vmatmul.mubr.f32.gmra.mxu0 %v372
    %v657 = vpop.f32.mrf.mxu0
    %v658 = vadd.f32 %v588, %v657
    %v659 = vpop.f32.mrf.mxu0
    %660 = vdwg.mxu0
    %v661 = vld [vmem:[#allocation8] sm:$0x1]
    %v662 = vld [vmem:[#allocation10] sm:$0x1]
    %663 = vadd.xlane.f32.xlu0 %v658
    %v664 = vpop.xlane.xlu0 %663
    %v665 = vrcp.pop 128.0
    %v666 = vmul.f32 %v664, %v665
    %v667 = vsub.f32 %v658, %v666
    %v668 = vmul.f32 %v667, %v667
    %669 = vadd.xlane.f32.xlu0 %v668
    %v670 = vpop.xlane.xlu0 %669
    %v671 = vmul.f32 %v670, %v665
    %v672 = vadd.f32 %v671, 1e-05
    %v673 = vrsqrt.pop %v672
    %v674 = vmul.f32 %v667, %v673
    %v676 = vlaneseq
    %v677 = vshrl.u32 %v676, 7
    %v678 = vsub.s32 0, %v677
    %v679 = vrot.slane %v661, %v678
    %v681 = vmul.f32 %v674, %v679
    %v683 = vlaneseq
    %v684 = vshrl.u32 %v683, 7
    %v685 = vsub.s32 0, %v684
    %v686 = vrot.slane %v662, %v685
    %v688 = vadd.f32 %v681, %v686
    %v689 = vlaneseq
    %v690 = vand.u32 %v689, 127
    %vm691 = vcmp.ne.s32.totalorder %v690, 0
    %vm692 = vcmp.ne.s32.totalorder %v690, 127
    %693 = vrot.lane.b32.xlu0 %v688, 1
    %v694 = vpop.permute.xlu0 %693
    %v695 = vsel %vm691, %v694, 0.0
    %696 = vrot.lane.b32.xlu0 %v688, 127
    %v697 = vpop.permute.xlu0 %696
    %v698 = vsel %vm692, %v697, 0.0
    %v699 = vadd.f32 %v695, %v688
    %v700 = vadd.f32 %v699, %v698
    %v701 = vld [vmem:[%s5] sm:$0x1]
    %v702 = vlaneseq
    %v703 = vshrl.u32 %v702, 7
    %v704 = vsub.s32 0, %v703
    %v705 = vrot.slane %v701, %v704
    %v706 = vadd.f32 %v700, %v705
    %v707 = vmul.f32 %v706, 0.5
    %v708 = vmul.f32 %v706, 0.70710677
    %v709 = verf.f32.pop %v708
    %v710 = vadd.f32 %v709, 1.0
    %v711 = vmul.f32 %v707, %v710
    %v712 = vld [vmem:[%s6] sm:$0x1]
    %v713 = vld [vmem:[%s7] sm:$0x1]
    %714 = vadd.xlane.f32.xlu0 %v711
    %v715 = vpop.xlane.xlu0 %714
    %v716 = vmul.f32 %v715, %v665
    %v717 = vsub.f32 %v711, %v716
    %v718 = vmul.f32 %v717, %v717
    %719 = vadd.xlane.f32.xlu0 %v718
    %v720 = vpop.xlane.xlu0 %719
    %v721 = vmul.f32 %v720, %v665
    %v722 = vadd.f32 %v721, 1e-05
    %v723 = vrsqrt.pop %v722
    %v724 = vmul.f32 %v717, %v723
    %v725 = vlaneseq
    %v726 = vshrl.u32 %v725, 7
    %v727 = vsub.s32 0, %v726
    %v728 = vrot.slane %v712, %v727
    %v729 = vmul.f32 %v724, %v728
    %v730 = vlaneseq
    %v731 = vshrl.u32 %v730, 7
    %v732 = vsub.s32 0, %v731
    %v733 = vrot.slane %v713, %v732
    %v734 = vadd.f32 %v729, %v733
    %735 = vrot.lane.b32.xlu0 %v734, 1
    %v736 = vpop.permute.xlu0 %735
    %v737 = vsel %vm691, %v736, 0.0
    %738 = vrot.lane.b32.xlu0 %v734, 127
    %v739 = vpop.permute.xlu0 %738
    %v740 = vsel %vm692, %v739, 0.0
    %v741 = vadd.f32 %v737, %v734
    %v742 = vadd.f32 %v741, %v740
    %v743 = vld [vmem:[%s5 + $0x1] sm:$0x1]
    %v744 = vlaneseq
    %v745 = vshrl.u32 %v744, 7
    %v746 = vsub.s32 0, %v745
    %v747 = vrot.slane %v743, %v746
    %v748 = vadd.f32 %v742, %v747
    %v749 = vmul.f32 %v748, 0.5
    %v750 = vmul.f32 %v748, 0.70710677
    %v751 = verf.f32.pop %v750
    %v752 = vadd.f32 %v751, 1.0
    %v753 = vmul.f32 %v749, %v752
    %v754 = vld [vmem:[%s6 + $0x1] sm:$0x1]
    %v755 = vld [vmem:[%s7 + $0x1] sm:$0x1]
    %756 = vadd.xlane.f32.xlu0 %v753
    %v757 = vpop.xlane.xlu0 %756
    %v758 = vmul.f32 %v757, %v665
    %v759 = vsub.f32 %v753, %v758
    %v760 = vmul.f32 %v759, %v759
    %761 = vadd.xlane.f32.xlu0 %v760
    %v762 = vpop.xlane.xlu0 %761
    %v763 = vmul.f32 %v762, %v665
    %v764 = vadd.f32 %v763, 1e-05
    %v765 = vrsqrt.pop %v764
    %v766 = vmul.f32 %v759, %v765
    %v767 = vlaneseq
    %v768 = vshrl.u32 %v767, 7
    %v769 = vsub.s32 0, %v768
    %v770 = vrot.slane %v754, %v769
    %v771 = vmul.f32 %v766, %v770
    %v772 = vlaneseq
    %v773 = vshrl.u32 %v772, 7
    %v774 = vsub.s32 0, %v773
    %v775 = vrot.slane %v755, %v774
    %v776 = vadd.f32 %v771, %v775
    %777 = vrot.lane.b32.xlu0 %v776, 1
    %v778 = vpop.permute.xlu0 %777
    %v779 = vsel %vm691, %v778, 0.0
    %780 = vrot.lane.b32.xlu0 %v776, 127
    %v781 = vpop.permute.xlu0 %780
    %v782 = vsel %vm692, %v781, 0.0
    %v783 = vadd.f32 %v779, %v776
    %v784 = vadd.f32 %v783, %v782
    %v785 = vld [vmem:[%s5 + $0x2] sm:$0x1]
    %v786 = vlaneseq
    %v787 = vshrl.u32 %v786, 7
    %v788 = vsub.s32 0, %v787
    %v789 = vrot.slane %v785, %v788
    %v790 = vadd.f32 %v784, %v789
    %v791 = vmul.f32 %v790, 0.5
    %v792 = vmul.f32 %v790, 0.70710677
    %v793 = verf.f32.pop %v792
    %v794 = vadd.f32 %v793, 1.0
    %v795 = vmul.f32 %v791, %v794
    %v796 = vld [vmem:[%s6 + $0x2] sm:$0x1]
    %v797 = vld [vmem:[%s7 + $0x2] sm:$0x1]
    %798 = vadd.xlane.f32.xlu0 %v795
    %v799 = vpop.xlane.xlu0 %798
    %v800 = vmul.f32 %v799, %v665
    %v801 = vsub.f32 %v795, %v800
    %v802 = vmul.f32 %v801, %v801
    %803 = vadd.xlane.f32.xlu0 %v802
    %v804 = vpop.xlane.xlu0 %803
    %v805 = vmul.f32 %v804, %v665
    %v806 = vadd.f32 %v805, 1e-05
    %v807 = vrsqrt.pop %v806
    %v808 = vmul.f32 %v801, %v807
    %v809 = vlaneseq
    %v810 = vshrl.u32 %v809, 7
    %v811 = vsub.s32 0, %v810
    %v812 = vrot.slane %v796, %v811
    %v813 = vmul.f32 %v808, %v812
    %v814 = vlaneseq
    %v815 = vshrl.u32 %v814, 7
    %v816 = vsub.s32 0, %v815
    %v817 = vrot.slane %v797, %v816
    %v818 = vadd.f32 %v813, %v817
    %819 = vrot.lane.b32.xlu0 %v818, 1
    %v820 = vpop.permute.xlu0 %819
    %v821 = vsel %vm691, %v820, 0.0
    %822 = vrot.lane.b32.xlu0 %v818, 127
    %v823 = vpop.permute.xlu0 %822
    %v824 = vsel %vm692, %v823, 0.0
    %v825 = vadd.f32 %v821, %v818
    %v826 = vadd.f32 %v825, %v824
    %v827 = vld [vmem:[%s5 + $0x3] sm:$0x1]
    %v828 = vlaneseq
    %v829 = vshrl.u32 %v828, 7
    %v830 = vsub.s32 0, %v829
    %v831 = vrot.slane %v827, %v830
    %v832 = vadd.f32 %v826, %v831
    %v833 = vmul.f32 %v832, 0.5
    %v834 = vmul.f32 %v832, 0.70710677
    %v835 = verf.f32.pop %v834
    %v836 = vadd.f32 %v835, 1.0
    %v837 = vmul.f32 %v833, %v836
    %v838 = vld [vmem:[%s6 + $0x3] sm:$0x1]
    %v839 = vld [vmem:[%s7 + $0x3] sm:$0x1]
    %840 = vadd.xlane.f32.xlu0 %v837
    %v841 = vpop.xlane.xlu0 %840
    %v842 = vmul.f32 %v841, %v665
    %v843 = vsub.f32 %v837, %v842
    %v844 = vmul.f32 %v843, %v843
    %845 = vadd.xlane.f32.xlu0 %v844
    %v846 = vpop.xlane.xlu0 %845
    %v847 = vmul.f32 %v846, %v665
    %v848 = vadd.f32 %v847, 1e-05
    %v849 = vrsqrt.pop %v848
    %v850 = vmul.f32 %v843, %v849
    %v851 = vlaneseq
    %v852 = vshrl.u32 %v851, 7
    %v853 = vsub.s32 0, %v852
    %v854 = vrot.slane %v838, %v853
    %v855 = vmul.f32 %v850, %v854
    %v856 = vlaneseq
    %v857 = vshrl.u32 %v856, 7
    %v858 = vsub.s32 0, %v857
    %v859 = vrot.slane %v839, %v858
    %v860 = vadd.f32 %v855, %v859
    %v861 = vld [vmem:[#allocation11] sm:$0xff]
    %v862 = vld [vmem:[#allocation11 + $0x8] sm:$0xff]
    %v863 = vld [vmem:[#allocation11 + $0x10] sm:$0xff]
    %v864 = vld [vmem:[#allocation11 + $0x18] sm:$0xff]
    %v865 = vld [vmem:[#allocation11 + $0x20] sm:$0xff]
    %v866 = vld [vmem:[#allocation11 + $0x28] sm:$0xff]
    %v867 = vld [vmem:[#allocation11 + $0x30] sm:$0xff]
    %v868 = vld [vmem:[#allocation11 + $0x38] sm:$0xff]
    %v869 = vld [vmem:[#allocation11 + $0x40] sm:$0xff]
    %v870 = vld [vmem:[#allocation11 + $0x48] sm:$0xff]
    %v871 = vld [vmem:[#allocation11 + $0x50] sm:$0xff]
    %v872 = vld [vmem:[#allocation11 + $0x58] sm:$0xff]
    %v873 = vld [vmem:[#allocation11 + $0x60] sm:$0xff]
    %v874 = vld [vmem:[#allocation11 + $0x68] sm:$0xff]
    %v875 = vld [vmem:[#allocation11 + $0x70] sm:$0xff]
    %v876 = vld [vmem:[#allocation11 + $0x78] sm:$0xff]
    %v877 = vld [vmem:[%s9] sm:$0x1]
    %v879 = vlaneseq
    %v880 = vshrl.u32 %v879, 7
    %v881 = vsub.s32 0, %v880
    %v882 = vrot.slane %v877, %v881
    %884 = vmatprep.subr.mxu0 0.0
    %885 = vmatpush1.msra.mxu0 %v876
    %886 = vmatprep.subr.mxu0 0.0
    %887 = vmatpush1.msra.mxu0 %v875
    %888 = vmatprep.subr.mxu0 0.0
    %889 = vmatpush1.msra.mxu0 %v874
    %890 = vmatprep.subr.mxu0 0.0
    %891 = vmatpush1.msra.mxu0 %v873
    %892 = vmatprep.subr.mxu0 0.0
    %893 = vmatpush1.msra.mxu0 %v872
    %894 = vmatprep.subr.mxu0 0.0
    %895 = vmatpush1.msra.mxu0 %v871
    %896 = vmatprep.subr.mxu0 0.0
    %897 = vmatpush1.msra.mxu0 %v870
    %898 = vmatprep.subr.mxu0 0.0
    %899 = vmatpush1.msra.mxu0 %v869
    %900 = vmatprep.subr.mxu0 0.0
    %901 = vmatpush1.msra.mxu0 %v868
    %902 = vmatprep.subr.mxu0 0.0
    %903 = vmatpush1.msra.mxu0 %v867
    %904 = vmatprep.subr.mxu0 0.0
    %905 = vmatpush1.msra.mxu0 %v866
    %906 = vmatprep.subr.mxu0 0.0
    %907 = vmatpush1.msra.mxu0 %v865
    %908 = vmatprep.subr.mxu0 0.0
    %909 = vmatpush1.msra.mxu0 %v864
    %910 = vmatprep.subr.mxu0 0.0
    %911 = vmatpush1.msra.mxu0 %v863
    %912 = vmatprep.subr.mxu0 0.0
    %913 = vmatpush1.msra.mxu0 %v862
    %914 = vmatprep.subr.mxu0 0.0
    %915 = vmatpush1.msra.mxu0 %v861
    %916 = vmatprep.subr.mxu0 0.0
    %917 = vmatpush2.msra.mxu0 0.0
    %918 = vmatprep.subr.mxu0 0.0
    %919 = vmatpush2.msra.mxu0 0.0
    %920 = vmatprep.subr.mxu0 0.0
    %921 = vmatpush2.msra.mxu0 0.0
    %922 = vmatprep.subr.mxu0 0.0
    %923 = vmatpush2.msra.mxu0 0.0
    %924 = vmatprep.subr.mxu0 0.0
    %925 = vmatpush2.msra.mxu0 0.0
    %926 = vmatprep.subr.mxu0 0.0
    %927 = vmatpush2.msra.mxu0 0.0
    %928 = vmatprep.subr.mxu0 0.0
    %929 = vmatpush2.msra.mxu0 0.0
    %930 = vmatprep.subr.mxu0 0.0
    %931 = vmatpush2.msra.mxu0 0.0
    %932 = vmatprep.subr.mxu0 0.0
    %933 = vmatpush2.msra.mxu0 0.0
    %934 = vmatprep.subr.mxu0 0.0
    %935 = vmatpush2.msra.mxu0 0.0
    %936 = vmatprep.subr.mxu0 0.0
    %937 = vmatpush2.msra.mxu0 0.0
    %938 = vmatprep.subr.mxu0 0.0
    %939 = vmatpush2.msra.mxu0 0.0
    %940 = vmatprep.subr.mxu0 0.0
    %941 = vmatpush2.msra.mxu0 0.0
    %942 = vmatprep.subr.mxu0 0.0
    %943 = vmatpush2.msra.mxu0 0.0
    %944 = vmatprep.subr.mxu0 0.0
    %945 = vmatpush2.msra.mxu0 0.0
    %946 = vmatprep.subr.mxu0 0.0
    %947 = vmatpush2.msra.mxu0 0.0
    %948 = vmatprep.mubr.f32.mxu0 0.0
    %949 = vmatmul.mubr.f32.gmra.mxu0 %v860
    %v950 = vpop.f32.mrf.mxu0
    %v951 = vadd.f32 %v882, %v950
    %v952 = vpop.f32.mrf.mxu0
    %953 = vdwg.mxu0
    %954 = vst [vmem:[#allocation13] sm:$0xff] %v951
    // Predicated region
    $region66: #{tpu_custom_call.1} parent=1 // pred_check
      _
    $region67: #{tpu_custom_call.1} parent=1 // pred_check_branch
      %956 = sbr.rel (0) target = $region69
    $region68: #{tpu_custom_call.1} parent=1 // pred_region
      %s958 = ssub.s32 128, 128
      %959 = vsyncadd [#allocation4], %s958
      %s961 = sshll.u32 [#allocation13], 4
      %s962 = int_to_ptr.vmem [resolvable:$true] %s961
      %964 = dma.vmem_to_hbm [thread:$0]  %s962, 128, %s10, [#allocation4]
    $region69: #{tpu_custom_call.1} parent=1 // pred_fallthru
      _
    // Predicated region
    $region70: #{tpu_custom_call.1} parent=1 // pred_check
      _
    $region71: #{tpu_custom_call.1} parent=1 // pred_check_branch
      %966 = sbr.rel (0) target = $region73
    $region72: #{tpu_custom_call.1} parent=1 // pred_region
      %967 = dma.done [#allocation4], 128
    $region73: #{tpu_custom_call.1} parent=1 // pred_fallthru
      _
    %968 = vsyncpa [#allocation3], 1
    %969 = vsyncpa [#allocation6], 1
    %970 = vsyncpa [#allocation9], 1
    %971 = vsyncpa [#allocation12], 1
    %972 = vsyncpa [#allocation4], 1

</llo_original>
